<compile_context>
chip_gen: v7x
topology: tpu7x:2x2x1
jax: 0.10.0
libtpu: 0.0.40
codegen_flags: <defaults>
</compile_context>

<pallas_src>
import math
from functools import partial

import jax
import jax.numpy as jnp
from jax import lax
from jax.experimental import pallas as pl
from jax.experimental.pallas import tpu as pltpu


def _mha_kernel(q_ref, k_ref, v_ref,
                wq_ref, bq_ref, wk_ref, bk_ref, wv_ref, bv_ref,
                wo_ref, bo_ref,
                out_ref, prob_ref,
                *, num_heads, d_key, scale):
    """Grid = (B // block_b,). Each step handles block_b full batch rows, all heads."""
    bt, N, E = q_ref.shape
    H, D = num_heads, d_key
    M = H * D
    cdt = jnp.bfloat16  # MXU operand dtype (f32 accumulation everywhere)

    # ---- fused Q/K/V projections for all heads at once: (bt*N, E) @ (E, M) ----
    qe = q_ref[...].reshape(bt * N, E).astype(cdt)
    ke = k_ref[...].reshape(bt * N, E).astype(cdt)
    ve = v_ref[...].reshape(bt * N, E).astype(cdt)

    wq = wq_ref[...].astype(cdt)   # (E, M)
    wk = wk_ref[...].astype(cdt)
    wv = wv_ref[...].astype(cdt)

    q = jnp.dot(qe, wq, preferred_element_type=jnp.float32) + bq_ref[...]   # (bt*N, M) f32
    k = jnp.dot(ke, wk, preferred_element_type=jnp.float32) + bk_ref[...]
    v = jnp.dot(ve, wv, preferred_element_type=jnp.float32) + bv_ref[...]

    # ---- per (batch-row, head) scaled dot-product attention (trace-time unrolled) ----
    # TODO(synk): mask branch (masked_fill with -1e10) omitted — module is exercised with mask=None.
    # TODO(synk): nn.Dropout on attention_prob is identity in eval/inference mode.
    ctx_rows = []
    for b in range(bt):
        q_b = q[b * N:(b + 1) * N]          # (N, M)
        k_b = k[b * N:(b + 1) * N]
        v_b = v[b * N:(b + 1) * N]
        head_ctx = []
        for h in range(H):
            qh = q_b[:, h * D:(h + 1) * D].astype(cdt)     # (N, D)
            kh = k_b[:, h * D:(h + 1) * D].astype(cdt)
            vh = v_b[:, h * D:(h + 1) * D].astype(cdt)

            # scores = q @ k.T (contraction on D), scaled.
            s = lax.dot_general(qh, kh, (((1,), (1,)), ((), ())),
                                preferred_element_type=jnp.float32) * scale   # (N, N) f32

            # numerically-stable softmax; reciprocal goes to the EUP slot.
            s = s - jnp.max(s, axis=-1, keepdims=True)
            p = jnp.exp(s)
            p = p * pl.reciprocal(jnp.sum(p, axis=-1, keepdims=True), approx=True)

            prob_ref[b, h] = p.astype(prob_ref.dtype)

            head_ctx.append(jnp.dot(p.astype(cdt), vh,
                                    preferred_element_type=jnp.float32))      # (N, D)
        ctx_rows.append(jnp.concatenate(head_ctx, axis=-1))                   # (N, M)
    ctx = jnp.concatenate(ctx_rows, axis=0)                                   # (bt*N, M)

    # ---- single fused output projection: (bt*N, M) @ (M, E) ----
    out = jnp.dot(ctx.astype(cdt), wo_ref[...].astype(cdt),
                  preferred_element_type=jnp.float32) + bo_ref[...]           # (bt*N, E)
    out_ref[...] = out.reshape(bt, N, E).astype(out_ref.dtype)


def multi_head_attention(q_embed, k_embed, v_embed, params, num_heads, *, block_b=None):
    """Returns (output[B,N,E], attention_prob[B,H,N,N]) like the PyTorch module."""
    B, N, E = q_embed.shape
    M = params["wq"].shape[0]            # d_model
    H = num_heads
    D = M // H                           # d_key
    scale = 1.0 / math.sqrt(float(D))

    # Pack a few batch rows per grid step when N is small (fills MXU rows / sublanes);
    # cap the unroll and require an exact divisor of B.
    if block_b is None:
        target = max(1, min(8, 256 // max(N, 1)))
        block_b = 1
        for cand in range(min(B, target), 0, -1):
            if B % cand == 0:
                block_b = cand
                break

    # Glue: pre-transpose Linear weights so the kernel does pure right-matmuls (x @ W.T).
    wq_t = params["wq"].T                 # (E, M)
    wk_t = params["wk"].T                 # (E, M)
    wv_t = params["wv"].T                 # (E, M)
    wo_t = params["wo"].T                 # (M, E)
    bq = params["bq"].reshape(1, M)
    bk = params["bk"].reshape(1, M)
    bv = params["bv"].reshape(1, M)
    bo = params["bo"].reshape(1, E)

    # Embedding blocks follow the batch-tile grid; weights/biases are grid-invariant
    # (same block index every step => DMA'd once, VMEM-resident).
    emb_spec = pl.BlockSpec((block_b, N, E), lambda b: (b, 0, 0))
    wqkv_spec = pl.BlockSpec((E, M), lambda b: (0, 0))
    bqkv_spec = pl.BlockSpec((1, M), lambda b: (0, 0))
    wo_spec = pl.BlockSpec((M, E), lambda b: (0, 0))
    bo_spec = pl.BlockSpec((1, E), lambda b: (0, 0))

    out_spec = pl.BlockSpec((block_b, N, E), lambda b: (b, 0, 0))
    prob_spec = pl.BlockSpec((block_b, H, N, N), lambda b: (b, 0, 0, 0))

    # VMEM budget: double-buffered I/O blocks + resident weights + slack, capped for v7x.
    itemsize = 4
    blk_io = block_b * N * E * itemsize
    blk_prob = block_b * H * N * N * itemsize
    weights = (3 * E * M + M * E + 3 * M + E) * itemsize
    est = 2 * (4 * blk_io + blk_prob) + 2 * weights + (8 << 20)
    vmem_limit = int(min(max(est, 32 << 20), 64 << 20))

    out, prob = pl.pallas_call(
        partial(_mha_kernel, num_heads=H, d_key=D, scale=scale),
        out_shape=(
            jax.ShapeDtypeStruct((B, N, E), q_embed.dtype),
            jax.ShapeDtypeStruct((B, H, N, N), jnp.float32),
        ),
        grid=(B // block_b,),
        in_specs=[
            emb_spec, emb_spec, emb_spec,
            wqkv_spec, bqkv_spec,
            wqkv_spec, bqkv_spec,
            wqkv_spec, bqkv_spec,
            wo_spec, bo_spec,
        ],
        out_specs=(out_spec, prob_spec),
        compiler_params=pltpu.CompilerParams(
            dimension_semantics=("parallel",),
            vmem_limit_bytes=vmem_limit,
        ),
    )(q_embed, k_embed, v_embed,
      wq_t, bq, wk_t, bk, wv_t, bv,
      wo_t, bo)
    return out, prob


def _reference(q_embed, k_embed, v_embed, params, num_heads):
    """Plain-JAX reference mirroring the PyTorch forward (mask=None, eval dropout)."""
    B, N, E = q_embed.shape
    M = params["wq"].shape[0]
    H = num_heads
    D = M // H

    def lin(x, w, b):
        return x @ w.T + b

    q = lin(q_embed, params["wq"], params["bq"]).reshape(B, N, H, D).transpose(0, 2, 1, 3)
    k = lin(k_embed, params["wk"], params["bk"]).reshape(B, N, H, D).transpose(0, 2, 1, 3)
    v = lin(v_embed, params["wv"], params["bv"]).reshape(B, N, H, D).transpose(0, 2, 1, 3)
    s = jnp.einsum("bhqd,bhkd->bhqk", q, k) / math.sqrt(float(D))
    p = jax.nn.softmax(s, axis=-1)
    ctx = jnp.einsum("bhal,bhlv->bhav", p, v).transpose(0, 2, 1, 3).reshape(B, N, M)
    out = lin(ctx, params["wo"], params["bo"])
    return out, p


if __name__ == "__main__":
    # Small shapes consistent with the module's forward.
    B, N = 2, 8            # batch, seq_len
    d_embed, d_model, num_heads = 16, 32, 4

    key = jax.random.PRNGKey(0)
    ks = jax.random.split(key, 11)
    params = {
        "wq": jax.random.normal(ks[0], (d_model, d_embed), jnp.float32) * 0.1,
        "bq": jax.random.normal(ks[1], (d_model,), jnp.float32) * 0.1,
        "wk": jax.random.normal(ks[2], (d_model, d_embed), jnp.float32) * 0.1,
        "bk": jax.random.normal(ks[3], (d_model,), jnp.float32) * 0.1,
        "wv": jax.random.normal(ks[4], (d_model, d_embed), jnp.float32) * 0.1,
        "bv": jax.random.normal(ks[5], (d_model,), jnp.float32) * 0.1,
        "wo": jax.random.normal(ks[6], (d_embed, d_model), jnp.float32) * 0.1,
        "bo": jax.random.normal(ks[7], (d_embed,), jnp.float32) * 0.1,
    }
    q_embed = jax.random.normal(ks[8], (B, N, d_embed), jnp.float32)
    k_embed = jax.random.normal(ks[9], (B, N, d_embed), jnp.float32)
    v_embed = jax.random.normal(ks[10], (B, N, d_embed), jnp.float32)

    out, prob = multi_head_attention(q_embed, k_embed, v_embed, params, num_heads)
    out = jax.block_until_ready(out)
    prob = jax.block_until_ready(prob)

    out_ref, prob_ref = _reference(q_embed, k_embed, v_embed, params, num_heads)
    assert out.shape == (B, N, d_embed) and prob.shape == (B, num_heads, N, N)
    assert jnp.allclose(out, out_ref, rtol=2e-2, atol=2e-2), "output mismatch"
    assert jnp.allclose(prob, prob_ref, rtol=2e-2, atol=2e-2), "attention_prob mismatch"

    print("KERNEL_OK")
</pallas_src>

<mosaic_0001>
module attributes {stable_mosaic.version = 11 : i64} {
  func.func @_mha_kernel(%arg0: i32, %arg1: memref<2x8x16xf32, #tpu.memory_space<vmem>>, %arg2: memref<2x8x16xf32, #tpu.memory_space<vmem>>, %arg3: memref<2x8x16xf32, #tpu.memory_space<vmem>>, %arg4: memref<16x32xf32, #tpu.memory_space<vmem>>, %arg5: memref<1x32xf32, #tpu.memory_space<vmem>>, %arg6: memref<16x32xf32, #tpu.memory_space<vmem>>, %arg7: memref<1x32xf32, #tpu.memory_space<vmem>>, %arg8: memref<16x32xf32, #tpu.memory_space<vmem>>, %arg9: memref<1x32xf32, #tpu.memory_space<vmem>>, %arg10: memref<32x16xf32, #tpu.memory_space<vmem>>, %arg11: memref<1x16xf32, #tpu.memory_space<vmem>>, %arg12: memref<2x8x16xf32, #tpu.memory_space<vmem>>, %arg13: memref<2x4x8x8xf32, #tpu.memory_space<vmem>>) attributes {dimension_semantics = [#tpu.dimension_semantics<parallel>], iteration_bounds = array<i64: 1>, scalar_prefetch = 0 : i64, scratch_operands = 0 : i64, tpu.core_type = #tpu.core_type<tc>, window_params = [{transform_indices = @transform_0, window_bounds = array<i64: 2, 8, 16>}, {transform_indices = @transform_1, window_bounds = array<i64: 2, 8, 16>}, {transform_indices = @transform_2, window_bounds = array<i64: 2, 8, 16>}, {pipeline_mode = #tpu.pipeline_mode<synchronous>, transform_indices = @transform_3, window_bounds = array<i64: 16, 32>}, {pipeline_mode = #tpu.pipeline_mode<synchronous>, transform_indices = @transform_4, window_bounds = array<i64: 1, 32>}, {pipeline_mode = #tpu.pipeline_mode<synchronous>, transform_indices = @transform_5, window_bounds = array<i64: 16, 32>}, {pipeline_mode = #tpu.pipeline_mode<synchronous>, transform_indices = @transform_6, window_bounds = array<i64: 1, 32>}, {pipeline_mode = #tpu.pipeline_mode<synchronous>, transform_indices = @transform_7, window_bounds = array<i64: 16, 32>}, {pipeline_mode = #tpu.pipeline_mode<synchronous>, transform_indices = @transform_8, window_bounds = array<i64: 1, 32>}, {pipeline_mode = #tpu.pipeline_mode<synchronous>, transform_indices = @transform_9, window_bounds = array<i64: 32, 16>}, {pipeline_mode = #tpu.pipeline_mode<synchronous>, transform_indices = @transform_10, window_bounds = array<i64: 1, 16>}, {transform_indices = @transform_11, window_bounds = array<i64: 2, 8, 16>}, {transform_indices = @transform_12, window_bounds = array<i64: 2, 4, 8, 8>}]} {
    %c0 = arith.constant 0 : index
    %c0_0 = arith.constant 0 : index
    %c0_1 = arith.constant 0 : index
    %0 = vector.load %arg1[%c0, %c0_0, %c0_1] : memref<2x8x16xf32, #tpu.memory_space<vmem>>, vector<2x8x16xf32>
    %1 = vector.shape_cast %0 : vector<2x8x16xf32> to vector<16x16xf32>
    %2 = arith.truncf %1 : vector<16x16xf32> to vector<16x16xbf16>
    %c0_2 = arith.constant 0 : index
    %c0_3 = arith.constant 0 : index
    %c0_4 = arith.constant 0 : index
    %3 = vector.load %arg2[%c0_2, %c0_3, %c0_4] : memref<2x8x16xf32, #tpu.memory_space<vmem>>, vector<2x8x16xf32>
    %4 = vector.shape_cast %3 : vector<2x8x16xf32> to vector<16x16xf32>
    %5 = arith.truncf %4 : vector<16x16xf32> to vector<16x16xbf16>
    %c0_5 = arith.constant 0 : index
    %c0_6 = arith.constant 0 : index
    %c0_7 = arith.constant 0 : index
    %6 = vector.load %arg3[%c0_5, %c0_6, %c0_7] : memref<2x8x16xf32, #tpu.memory_space<vmem>>, vector<2x8x16xf32>
    %7 = vector.shape_cast %6 : vector<2x8x16xf32> to vector<16x16xf32>
    %8 = arith.truncf %7 : vector<16x16xf32> to vector<16x16xbf16>
    %c0_8 = arith.constant 0 : index
    %c0_9 = arith.constant 0 : index
    %9 = vector.load %arg4[%c0_8, %c0_9] : memref<16x32xf32, #tpu.memory_space<vmem>>, vector<16x32xf32>
    %10 = arith.truncf %9 : vector<16x32xf32> to vector<16x32xbf16>
    %c0_10 = arith.constant 0 : index
    %c0_11 = arith.constant 0 : index
    %11 = vector.load %arg6[%c0_10, %c0_11] : memref<16x32xf32, #tpu.memory_space<vmem>>, vector<16x32xf32>
    %12 = arith.truncf %11 : vector<16x32xf32> to vector<16x32xbf16>
    %c0_12 = arith.constant 0 : index
    %c0_13 = arith.constant 0 : index
    %13 = vector.load %arg8[%c0_12, %c0_13] : memref<16x32xf32, #tpu.memory_space<vmem>>, vector<16x32xf32>
    %14 = arith.truncf %13 : vector<16x32xf32> to vector<16x32xbf16>
    %cst = arith.constant dense<0.000000e+00> : vector<16x32xf32>
    %15 = tpu.matmul %2, %10, %cst {dimension_numbers = #tpu.dot_dimension_numbers<[1], [0], [0], [1], [0, 0, 1, 1], [], []>} : vector<16x16xbf16>, vector<16x32xbf16>, vector<16x32xf32> -> vector<16x32xf32>
    %c0_14 = arith.constant 0 : index
    %c0_15 = arith.constant 0 : index
    %16 = vector.load %arg5[%c0_14, %c0_15] : memref<1x32xf32, #tpu.memory_space<vmem>>, vector<1x32xf32>
    %17 = vector.broadcast %16 : vector<1x32xf32> to vector<16x32xf32>
    %18 = arith.addf %15, %17 : vector<16x32xf32>
    %cst_16 = arith.constant dense<0.000000e+00> : vector<16x32xf32>
    %19 = tpu.matmul %5, %12, %cst_16 {dimension_numbers = #tpu.dot_dimension_numbers<[1], [0], [0], [1], [0, 0, 1, 1], [], []>} : vector<16x16xbf16>, vector<16x32xbf16>, vector<16x32xf32> -> vector<16x32xf32>
    %c0_17 = arith.constant 0 : index
    %c0_18 = arith.constant 0 : index
    %20 = vector.load %arg7[%c0_17, %c0_18] : memref<1x32xf32, #tpu.memory_space<vmem>>, vector<1x32xf32>
    %21 = vector.broadcast %20 : vector<1x32xf32> to vector<16x32xf32>
    %22 = arith.addf %19, %21 : vector<16x32xf32>
    %cst_19 = arith.constant dense<0.000000e+00> : vector<16x32xf32>
    %23 = tpu.matmul %8, %14, %cst_19 {dimension_numbers = #tpu.dot_dimension_numbers<[1], [0], [0], [1], [0, 0, 1, 1], [], []>} : vector<16x16xbf16>, vector<16x32xbf16>, vector<16x32xf32> -> vector<16x32xf32>
    %c0_20 = arith.constant 0 : index
    %c0_21 = arith.constant 0 : index
    %24 = vector.load %arg9[%c0_20, %c0_21] : memref<1x32xf32, #tpu.memory_space<vmem>>, vector<1x32xf32>
    %25 = vector.broadcast %24 : vector<1x32xf32> to vector<16x32xf32>
    %26 = arith.addf %23, %25 : vector<16x32xf32>
    %27 = vector.extract_strided_slice %18 {offsets = [0, 0], sizes = [8, 32], strides = [1, 1]} : vector<16x32xf32> to vector<8x32xf32>
    %28 = vector.extract_strided_slice %22 {offsets = [0, 0], sizes = [8, 32], strides = [1, 1]} : vector<16x32xf32> to vector<8x32xf32>
    %29 = vector.extract_strided_slice %26 {offsets = [0, 0], sizes = [8, 32], strides = [1, 1]} : vector<16x32xf32> to vector<8x32xf32>
    %30 = vector.extract_strided_slice %27 {offsets = [0, 0], sizes = [8, 8], strides = [1, 1]} : vector<8x32xf32> to vector<8x8xf32>
    %31 = arith.truncf %30 : vector<8x8xf32> to vector<8x8xbf16>
    %32 = vector.extract_strided_slice %28 {offsets = [0, 0], sizes = [8, 8], strides = [1, 1]} : vector<8x32xf32> to vector<8x8xf32>
    %33 = arith.truncf %32 : vector<8x8xf32> to vector<8x8xbf16>
    %34 = vector.extract_strided_slice %29 {offsets = [0, 0], sizes = [8, 8], strides = [1, 1]} : vector<8x32xf32> to vector<8x8xf32>
    %35 = arith.truncf %34 : vector<8x8xf32> to vector<8x8xbf16>
    %cst_22 = arith.constant dense<0.000000e+00> : vector<8x8xf32>
    %36 = tpu.matmul %31, %33, %cst_22 {dimension_numbers = #tpu.dot_dimension_numbers<[1], [1], [0], [0], [0, 0, 1, 0], [], []>} : vector<8x8xbf16>, vector<8x8xbf16>, vector<8x8xf32> -> vector<8x8xf32>
    %cst_23 = arith.constant 0.353553385 : f32
    %37 = vector.broadcast %cst_23 : f32 to vector<8x8xf32>
    %38 = arith.mulf %36, %37 : vector<8x8xf32>
    %cst_24 = arith.constant dense<0xFF800000> : vector<8xf32>
    %39 = vector.multi_reduction <maximumf>, %38, %cst_24 [1] : vector<8x8xf32> to vector<8xf32>
    %40 = vector.shape_cast %39 : vector<8xf32> to vector<8x1xf32>
    %41 = vector.broadcast %40 : vector<8x1xf32> to vector<8x8xf32>
    %42 = arith.subf %38, %41 : vector<8x8xf32>
    %43 = math.exp %42 : vector<8x8xf32>
    %cst_25 = arith.constant dense<0.000000e+00> : vector<8xf32>
    %44 = vector.multi_reduction <add>, %43, %cst_25 [1] : vector<8x8xf32> to vector<8xf32>
    %45 = vector.shape_cast %44 : vector<8xf32> to vector<8x1xf32>
    %46 = tpu.reciprocal %45 {approx = true} : vector<8x1xf32> -> vector<8x1xf32>
    %47 = vector.broadcast %46 : vector<8x1xf32> to vector<8x8xf32>
    %48 = arith.mulf %43, %47 : vector<8x8xf32>
    %c0_26 = arith.constant 0 : index
    %c0_27 = arith.constant 0 : index
    %c0_28 = arith.constant 0 : index
    %c0_29 = arith.constant 0 : index
    %49 = vector.load %arg13[%c0_26, %c0_27, %c0_28, %c0_29] : memref<2x4x8x8xf32, #tpu.memory_space<vmem>>, vector<1x1x8x8xf32>
    %50 = vector.shape_cast %49 : vector<1x1x8x8xf32> to vector<8x8xf32>
    %51 = vector.shape_cast %48 : vector<8x8xf32> to vector<1x1x8x8xf32>
    tpu.vector_store %arg13[%c0_26, %c0_27, %c0_28, %c0_29], %51 {strides = array<i32>} : memref<2x4x8x8xf32, #tpu.memory_space<vmem>>, vector<1x1x8x8xf32>,
    %52 = arith.truncf %48 : vector<8x8xf32> to vector<8x8xbf16>
    %cst_30 = arith.constant dense<0.000000e+00> : vector<8x8xf32>
    %53 = tpu.matmul %52, %35, %cst_30 {dimension_numbers = #tpu.dot_dimension_numbers<[1], [0], [0], [1], [0, 0, 1, 1], [], []>} : vector<8x8xbf16>, vector<8x8xbf16>, vector<8x8xf32> -> vector<8x8xf32>
    %54 = vector.extract_strided_slice %27 {offsets = [0, 8], sizes = [8, 8], strides = [1, 1]} : vector<8x32xf32> to vector<8x8xf32>
    %55 = arith.truncf %54 : vector<8x8xf32> to vector<8x8xbf16>
    %56 = vector.extract_strided_slice %28 {offsets = [0, 8], sizes = [8, 8], strides = [1, 1]} : vector<8x32xf32> to vector<8x8xf32>
    %57 = arith.truncf %56 : vector<8x8xf32> to vector<8x8xbf16>
    %58 = vector.extract_strided_slice %29 {offsets = [0, 8], sizes = [8, 8], strides = [1, 1]} : vector<8x32xf32> to vector<8x8xf32>
    %59 = arith.truncf %58 : vector<8x8xf32> to vector<8x8xbf16>
    %cst_31 = arith.constant dense<0.000000e+00> : vector<8x8xf32>
    %60 = tpu.matmul %55, %57, %cst_31 {dimension_numbers = #tpu.dot_dimension_numbers<[1], [1], [0], [0], [0, 0, 1, 0], [], []>} : vector<8x8xbf16>, vector<8x8xbf16>, vector<8x8xf32> -> vector<8x8xf32>
    %cst_32 = arith.constant 0.353553385 : f32
    %61 = vector.broadcast %cst_32 : f32 to vector<8x8xf32>
    %62 = arith.mulf %60, %61 : vector<8x8xf32>
    %cst_33 = arith.constant dense<0xFF800000> : vector<8xf32>
    %63 = vector.multi_reduction <maximumf>, %62, %cst_33 [1] : vector<8x8xf32> to vector<8xf32>
    %64 = vector.shape_cast %63 : vector<8xf32> to vector<8x1xf32>
    %65 = vector.broadcast %64 : vector<8x1xf32> to vector<8x8xf32>
    %66 = arith.subf %62, %65 : vector<8x8xf32>
    %67 = math.exp %66 : vector<8x8xf32>
    %cst_34 = arith.constant dense<0.000000e+00> : vector<8xf32>
    %68 = vector.multi_reduction <add>, %67, %cst_34 [1] : vector<8x8xf32> to vector<8xf32>
    %69 = vector.shape_cast %68 : vector<8xf32> to vector<8x1xf32>
    %70 = tpu.reciprocal %69 {approx = true} : vector<8x1xf32> -> vector<8x1xf32>
    %71 = vector.broadcast %70 : vector<8x1xf32> to vector<8x8xf32>
    %72 = arith.mulf %67, %71 : vector<8x8xf32>
    %c0_35 = arith.constant 0 : index
    %c1 = arith.constant 1 : index
    %c0_36 = arith.constant 0 : index
    %c0_37 = arith.constant 0 : index
    %73 = vector.load %arg13[%c0_35, %c1, %c0_36, %c0_37] : memref<2x4x8x8xf32, #tpu.memory_space<vmem>>, vector<1x1x8x8xf32>
    %74 = vector.shape_cast %73 : vector<1x1x8x8xf32> to vector<8x8xf32>
    %75 = vector.shape_cast %72 : vector<8x8xf32> to vector<1x1x8x8xf32>
    tpu.vector_store %arg13[%c0_35, %c1, %c0_36, %c0_37], %75 {strides = array<i32>} : memref<2x4x8x8xf32, #tpu.memory_space<vmem>>, vector<1x1x8x8xf32>,
    %76 = arith.truncf %72 : vector<8x8xf32> to vector<8x8xbf16>
    %cst_38 = arith.constant dense<0.000000e+00> : vector<8x8xf32>
    %77 = tpu.matmul %76, %59, %cst_38 {dimension_numbers = #tpu.dot_dimension_numbers<[1], [0], [0], [1], [0, 0, 1, 1], [], []>} : vector<8x8xbf16>, vector<8x8xbf16>, vector<8x8xf32> -> vector<8x8xf32>
    %78 = vector.extract_strided_slice %27 {offsets = [0, 16], sizes = [8, 8], strides = [1, 1]} : vector<8x32xf32> to vector<8x8xf32>
    %79 = arith.truncf %78 : vector<8x8xf32> to vector<8x8xbf16>
    %80 = vector.extract_strided_slice %28 {offsets = [0, 16], sizes = [8, 8], strides = [1, 1]} : vector<8x32xf32> to vector<8x8xf32>
    %81 = arith.truncf %80 : vector<8x8xf32> to vector<8x8xbf16>
    %82 = vector.extract_strided_slice %29 {offsets = [0, 16], sizes = [8, 8], strides = [1, 1]} : vector<8x32xf32> to vector<8x8xf32>
    %83 = arith.truncf %82 : vector<8x8xf32> to vector<8x8xbf16>
    %cst_39 = arith.constant dense<0.000000e+00> : vector<8x8xf32>
    %84 = tpu.matmul %79, %81, %cst_39 {dimension_numbers = #tpu.dot_dimension_numbers<[1], [1], [0], [0], [0, 0, 1, 0], [], []>} : vector<8x8xbf16>, vector<8x8xbf16>, vector<8x8xf32> -> vector<8x8xf32>
    %cst_40 = arith.constant 0.353553385 : f32
    %85 = vector.broadcast %cst_40 : f32 to vector<8x8xf32>
    %86 = arith.mulf %84, %85 : vector<8x8xf32>
    %cst_41 = arith.constant dense<0xFF800000> : vector<8xf32>
    %87 = vector.multi_reduction <maximumf>, %86, %cst_41 [1] : vector<8x8xf32> to vector<8xf32>
    %88 = vector.shape_cast %87 : vector<8xf32> to vector<8x1xf32>
    %89 = vector.broadcast %88 : vector<8x1xf32> to vector<8x8xf32>
    %90 = arith.subf %86, %89 : vector<8x8xf32>
    %91 = math.exp %90 : vector<8x8xf32>
    %cst_42 = arith.constant dense<0.000000e+00> : vector<8xf32>
    %92 = vector.multi_reduction <add>, %91, %cst_42 [1] : vector<8x8xf32> to vector<8xf32>
    %93 = vector.shape_cast %92 : vector<8xf32> to vector<8x1xf32>
    %94 = tpu.reciprocal %93 {approx = true} : vector<8x1xf32> -> vector<8x1xf32>
    %95 = vector.broadcast %94 : vector<8x1xf32> to vector<8x8xf32>
    %96 = arith.mulf %91, %95 : vector<8x8xf32>
    %c0_43 = arith.constant 0 : index
    %c2 = arith.constant 2 : index
    %c0_44 = arith.constant 0 : index
    %c0_45 = arith.constant 0 : index
    %97 = vector.load %arg13[%c0_43, %c2, %c0_44, %c0_45] : memref<2x4x8x8xf32, #tpu.memory_space<vmem>>, vector<1x1x8x8xf32>
    %98 = vector.shape_cast %97 : vector<1x1x8x8xf32> to vector<8x8xf32>
    %99 = vector.shape_cast %96 : vector<8x8xf32> to vector<1x1x8x8xf32>
    tpu.vector_store %arg13[%c0_43, %c2, %c0_44, %c0_45], %99 {strides = array<i32>} : memref<2x4x8x8xf32, #tpu.memory_space<vmem>>, vector<1x1x8x8xf32>,
    %100 = arith.truncf %96 : vector<8x8xf32> to vector<8x8xbf16>
    %cst_46 = arith.constant dense<0.000000e+00> : vector<8x8xf32>
    %101 = tpu.matmul %100, %83, %cst_46 {dimension_numbers = #tpu.dot_dimension_numbers<[1], [0], [0], [1], [0, 0, 1, 1], [], []>} : vector<8x8xbf16>, vector<8x8xbf16>, vector<8x8xf32> -> vector<8x8xf32>
    %102 = vector.extract_strided_slice %27 {offsets = [0, 24], sizes = [8, 8], strides = [1, 1]} : vector<8x32xf32> to vector<8x8xf32>
    %103 = arith.truncf %102 : vector<8x8xf32> to vector<8x8xbf16>
    %104 = vector.extract_strided_slice %28 {offsets = [0, 24], sizes = [8, 8], strides = [1, 1]} : vector<8x32xf32> to vector<8x8xf32>
    %105 = arith.truncf %104 : vector<8x8xf32> to vector<8x8xbf16>
    %106 = vector.extract_strided_slice %29 {offsets = [0, 24], sizes = [8, 8], strides = [1, 1]} : vector<8x32xf32> to vector<8x8xf32>
    %107 = arith.truncf %106 : vector<8x8xf32> to vector<8x8xbf16>
    %cst_47 = arith.constant dense<0.000000e+00> : vector<8x8xf32>
    %108 = tpu.matmul %103, %105, %cst_47 {dimension_numbers = #tpu.dot_dimension_numbers<[1], [1], [0], [0], [0, 0, 1, 0], [], []>} : vector<8x8xbf16>, vector<8x8xbf16>, vector<8x8xf32> -> vector<8x8xf32>
    %cst_48 = arith.constant 0.353553385 : f32
    %109 = vector.broadcast %cst_48 : f32 to vector<8x8xf32>
    %110 = arith.mulf %108, %109 : vector<8x8xf32>
    %cst_49 = arith.constant dense<0xFF800000> : vector<8xf32>
    %111 = vector.multi_reduction <maximumf>, %110, %cst_49 [1] : vector<8x8xf32> to vector<8xf32>
    %112 = vector.shape_cast %111 : vector<8xf32> to vector<8x1xf32>
    %113 = vector.broadcast %112 : vector<8x1xf32> to vector<8x8xf32>
    %114 = arith.subf %110, %113 : vector<8x8xf32>
    %115 = math.exp %114 : vector<8x8xf32>
    %cst_50 = arith.constant dense<0.000000e+00> : vector<8xf32>
    %116 = vector.multi_reduction <add>, %115, %cst_50 [1] : vector<8x8xf32> to vector<8xf32>
    %117 = vector.shape_cast %116 : vector<8xf32> to vector<8x1xf32>
    %118 = tpu.reciprocal %117 {approx = true} : vector<8x1xf32> -> vector<8x1xf32>
    %119 = vector.broadcast %118 : vector<8x1xf32> to vector<8x8xf32>
    %120 = arith.mulf %115, %119 : vector<8x8xf32>
    %c0_51 = arith.constant 0 : index
    %c3 = arith.constant 3 : index
    %c0_52 = arith.constant 0 : index
    %c0_53 = arith.constant 0 : index
    %121 = vector.load %arg13[%c0_51, %c3, %c0_52, %c0_53] : memref<2x4x8x8xf32, #tpu.memory_space<vmem>>, vector<1x1x8x8xf32>
    %122 = vector.shape_cast %121 : vector<1x1x8x8xf32> to vector<8x8xf32>
    %123 = vector.shape_cast %120 : vector<8x8xf32> to vector<1x1x8x8xf32>
    tpu.vector_store %arg13[%c0_51, %c3, %c0_52, %c0_53], %123 {strides = array<i32>} : memref<2x4x8x8xf32, #tpu.memory_space<vmem>>, vector<1x1x8x8xf32>,
    %124 = arith.truncf %120 : vector<8x8xf32> to vector<8x8xbf16>
    %cst_54 = arith.constant dense<0.000000e+00> : vector<8x8xf32>
    %125 = tpu.matmul %124, %107, %cst_54 {dimension_numbers = #tpu.dot_dimension_numbers<[1], [0], [0], [1], [0, 0, 1, 1], [], []>} : vector<8x8xbf16>, vector<8x8xbf16>, vector<8x8xf32> -> vector<8x8xf32>
    %126 = tpu.concatenate %53, %77, %101, %125 in 1 : vector<8x8xf32>, vector<8x8xf32>, vector<8x8xf32>, vector<8x8xf32> -> vector<8x32xf32>
    %127 = vector.extract_strided_slice %18 {offsets = [8, 0], sizes = [8, 32], strides = [1, 1]} : vector<16x32xf32> to vector<8x32xf32>
    %128 = vector.extract_strided_slice %22 {offsets = [8, 0], sizes = [8, 32], strides = [1, 1]} : vector<16x32xf32> to vector<8x32xf32>
    %129 = vector.extract_strided_slice %26 {offsets = [8, 0], sizes = [8, 32], strides = [1, 1]} : vector<16x32xf32> to vector<8x32xf32>
    %130 = vector.extract_strided_slice %127 {offsets = [0, 0], sizes = [8, 8], strides = [1, 1]} : vector<8x32xf32> to vector<8x8xf32>
    %131 = arith.truncf %130 : vector<8x8xf32> to vector<8x8xbf16>
    %132 = vector.extract_strided_slice %128 {offsets = [0, 0], sizes = [8, 8], strides = [1, 1]} : vector<8x32xf32> to vector<8x8xf32>
    %133 = arith.truncf %132 : vector<8x8xf32> to vector<8x8xbf16>
    %134 = vector.extract_strided_slice %129 {offsets = [0, 0], sizes = [8, 8], strides = [1, 1]} : vector<8x32xf32> to vector<8x8xf32>
    %135 = arith.truncf %134 : vector<8x8xf32> to vector<8x8xbf16>
    %cst_55 = arith.constant dense<0.000000e+00> : vector<8x8xf32>
    %136 = tpu.matmul %131, %133, %cst_55 {dimension_numbers = #tpu.dot_dimension_numbers<[1], [1], [0], [0], [0, 0, 1, 0], [], []>} : vector<8x8xbf16>, vector<8x8xbf16>, vector<8x8xf32> -> vector<8x8xf32>
    %cst_56 = arith.constant 0.353553385 : f32
    %137 = vector.broadcast %cst_56 : f32 to vector<8x8xf32>
    %138 = arith.mulf %136, %137 : vector<8x8xf32>
    %cst_57 = arith.constant dense<0xFF800000> : vector<8xf32>
    %139 = vector.multi_reduction <maximumf>, %138, %cst_57 [1] : vector<8x8xf32> to vector<8xf32>
    %140 = vector.shape_cast %139 : vector<8xf32> to vector<8x1xf32>
    %141 = vector.broadcast %140 : vector<8x1xf32> to vector<8x8xf32>
    %142 = arith.subf %138, %141 : vector<8x8xf32>
    %143 = math.exp %142 : vector<8x8xf32>
    %cst_58 = arith.constant dense<0.000000e+00> : vector<8xf32>
    %144 = vector.multi_reduction <add>, %143, %cst_58 [1] : vector<8x8xf32> to vector<8xf32>
    %145 = vector.shape_cast %144 : vector<8xf32> to vector<8x1xf32>
    %146 = tpu.reciprocal %145 {approx = true} : vector<8x1xf32> -> vector<8x1xf32>
    %147 = vector.broadcast %146 : vector<8x1xf32> to vector<8x8xf32>
    %148 = arith.mulf %143, %147 : vector<8x8xf32>
    %c1_59 = arith.constant 1 : index
    %c0_60 = arith.constant 0 : index
    %c0_61 = arith.constant 0 : index
    %c0_62 = arith.constant 0 : index
    %149 = vector.load %arg13[%c1_59, %c0_60, %c0_61, %c0_62] : memref<2x4x8x8xf32, #tpu.memory_space<vmem>>, vector<1x1x8x8xf32>
    %150 = vector.shape_cast %149 : vector<1x1x8x8xf32> to vector<8x8xf32>
    %151 = vector.shape_cast %148 : vector<8x8xf32> to vector<1x1x8x8xf32>
    tpu.vector_store %arg13[%c1_59, %c0_60, %c0_61, %c0_62], %151 {strides = array<i32>} : memref<2x4x8x8xf32, #tpu.memory_space<vmem>>, vector<1x1x8x8xf32>,
    %152 = arith.truncf %148 : vector<8x8xf32> to vector<8x8xbf16>
    %cst_63 = arith.constant dense<0.000000e+00> : vector<8x8xf32>
    %153 = tpu.matmul %152, %135, %cst_63 {dimension_numbers = #tpu.dot_dimension_numbers<[1], [0], [0], [1], [0, 0, 1, 1], [], []>} : vector<8x8xbf16>, vector<8x8xbf16>, vector<8x8xf32> -> vector<8x8xf32>
    %154 = vector.extract_strided_slice %127 {offsets = [0, 8], sizes = [8, 8], strides = [1, 1]} : vector<8x32xf32> to vector<8x8xf32>
    %155 = arith.truncf %154 : vector<8x8xf32> to vector<8x8xbf16>
    %156 = vector.extract_strided_slice %128 {offsets = [0, 8], sizes = [8, 8], strides = [1, 1]} : vector<8x32xf32> to vector<8x8xf32>
    %157 = arith.truncf %156 : vector<8x8xf32> to vector<8x8xbf16>
    %158 = vector.extract_strided_slice %129 {offsets = [0, 8], sizes = [8, 8], strides = [1, 1]} : vector<8x32xf32> to vector<8x8xf32>
    %159 = arith.truncf %158 : vector<8x8xf32> to vector<8x8xbf16>
    %cst_64 = arith.constant dense<0.000000e+00> : vector<8x8xf32>
    %160 = tpu.matmul %155, %157, %cst_64 {dimension_numbers = #tpu.dot_dimension_numbers<[1], [1], [0], [0], [0, 0, 1, 0], [], []>} : vector<8x8xbf16>, vector<8x8xbf16>, vector<8x8xf32> -> vector<8x8xf32>
    %cst_65 = arith.constant 0.353553385 : f32
    %161 = vector.broadcast %cst_65 : f32 to vector<8x8xf32>
    %162 = arith.mulf %160, %161 : vector<8x8xf32>
    %cst_66 = arith.constant dense<0xFF800000> : vector<8xf32>
    %163 = vector.multi_reduction <maximumf>, %162, %cst_66 [1] : vector<8x8xf32> to vector<8xf32>
    %164 = vector.shape_cast %163 : vector<8xf32> to vector<8x1xf32>
    %165 = vector.broadcast %164 : vector<8x1xf32> to vector<8x8xf32>
    %166 = arith.subf %162, %165 : vector<8x8xf32>
    %167 = math.exp %166 : vector<8x8xf32>
    %cst_67 = arith.constant dense<0.000000e+00> : vector<8xf32>
    %168 = vector.multi_reduction <add>, %167, %cst_67 [1] : vector<8x8xf32> to vector<8xf32>
    %169 = vector.shape_cast %168 : vector<8xf32> to vector<8x1xf32>
    %170 = tpu.reciprocal %169 {approx = true} : vector<8x1xf32> -> vector<8x1xf32>
    %171 = vector.broadcast %170 : vector<8x1xf32> to vector<8x8xf32>
    %172 = arith.mulf %167, %171 : vector<8x8xf32>
    %c1_68 = arith.constant 1 : index
    %c1_69 = arith.constant 1 : index
    %c0_70 = arith.constant 0 : index
    %c0_71 = arith.constant 0 : index
    %173 = vector.load %arg13[%c1_68, %c1_69, %c0_70, %c0_71] : memref<2x4x8x8xf32, #tpu.memory_space<vmem>>, vector<1x1x8x8xf32>
    %174 = vector.shape_cast %173 : vector<1x1x8x8xf32> to vector<8x8xf32>
    %175 = vector.shape_cast %172 : vector<8x8xf32> to vector<1x1x8x8xf32>
    tpu.vector_store %arg13[%c1_68, %c1_69, %c0_70, %c0_71], %175 {strides = array<i32>} : memref<2x4x8x8xf32, #tpu.memory_space<vmem>>, vector<1x1x8x8xf32>,
    %176 = arith.truncf %172 : vector<8x8xf32> to vector<8x8xbf16>
    %cst_72 = arith.constant dense<0.000000e+00> : vector<8x8xf32>
    %177 = tpu.matmul %176, %159, %cst_72 {dimension_numbers = #tpu.dot_dimension_numbers<[1], [0], [0], [1], [0, 0, 1, 1], [], []>} : vector<8x8xbf16>, vector<8x8xbf16>, vector<8x8xf32> -> vector<8x8xf32>
    %178 = vector.extract_strided_slice %127 {offsets = [0, 16], sizes = [8, 8], strides = [1, 1]} : vector<8x32xf32> to vector<8x8xf32>
    %179 = arith.truncf %178 : vector<8x8xf32> to vector<8x8xbf16>
    %180 = vector.extract_strided_slice %128 {offsets = [0, 16], sizes = [8, 8], strides = [1, 1]} : vector<8x32xf32> to vector<8x8xf32>
    %181 = arith.truncf %180 : vector<8x8xf32> to vector<8x8xbf16>
    %182 = vector.extract_strided_slice %129 {offsets = [0, 16], sizes = [8, 8], strides = [1, 1]} : vector<8x32xf32> to vector<8x8xf32>
    %183 = arith.truncf %182 : vector<8x8xf32> to vector<8x8xbf16>
    %cst_73 = arith.constant dense<0.000000e+00> : vector<8x8xf32>
    %184 = tpu.matmul %179, %181, %cst_73 {dimension_numbers = #tpu.dot_dimension_numbers<[1], [1], [0], [0], [0, 0, 1, 0], [], []>} : vector<8x8xbf16>, vector<8x8xbf16>, vector<8x8xf32> -> vector<8x8xf32>
    %cst_74 = arith.constant 0.353553385 : f32
    %185 = vector.broadcast %cst_74 : f32 to vector<8x8xf32>
    %186 = arith.mulf %184, %185 : vector<8x8xf32>
    %cst_75 = arith.constant dense<0xFF800000> : vector<8xf32>
    %187 = vector.multi_reduction <maximumf>, %186, %cst_75 [1] : vector<8x8xf32> to vector<8xf32>
    %188 = vector.shape_cast %187 : vector<8xf32> to vector<8x1xf32>
    %189 = vector.broadcast %188 : vector<8x1xf32> to vector<8x8xf32>
    %190 = arith.subf %186, %189 : vector<8x8xf32>
    %191 = math.exp %190 : vector<8x8xf32>
    %cst_76 = arith.constant dense<0.000000e+00> : vector<8xf32>
    %192 = vector.multi_reduction <add>, %191, %cst_76 [1] : vector<8x8xf32> to vector<8xf32>
    %193 = vector.shape_cast %192 : vector<8xf32> to vector<8x1xf32>
    %194 = tpu.reciprocal %193 {approx = true} : vector<8x1xf32> -> vector<8x1xf32>
    %195 = vector.broadcast %194 : vector<8x1xf32> to vector<8x8xf32>
    %196 = arith.mulf %191, %195 : vector<8x8xf32>
    %c1_77 = arith.constant 1 : index
    %c2_78 = arith.constant 2 : index
    %c0_79 = arith.constant 0 : index
    %c0_80 = arith.constant 0 : index
    %197 = vector.load %arg13[%c1_77, %c2_78, %c0_79, %c0_80] : memref<2x4x8x8xf32, #tpu.memory_space<vmem>>, vector<1x1x8x8xf32>
    %198 = vector.shape_cast %197 : vector<1x1x8x8xf32> to vector<8x8xf32>
    %199 = vector.shape_cast %196 : vector<8x8xf32> to vector<1x1x8x8xf32>
    tpu.vector_store %arg13[%c1_77, %c2_78, %c0_79, %c0_80], %199 {strides = array<i32>} : memref<2x4x8x8xf32, #tpu.memory_space<vmem>>, vector<1x1x8x8xf32>,
    %200 = arith.truncf %196 : vector<8x8xf32> to vector<8x8xbf16>
    %cst_81 = arith.constant dense<0.000000e+00> : vector<8x8xf32>
    %201 = tpu.matmul %200, %183, %cst_81 {dimension_numbers = #tpu.dot_dimension_numbers<[1], [0], [0], [1], [0, 0, 1, 1], [], []>} : vector<8x8xbf16>, vector<8x8xbf16>, vector<8x8xf32> -> vector<8x8xf32>
    %202 = vector.extract_strided_slice %127 {offsets = [0, 24], sizes = [8, 8], strides = [1, 1]} : vector<8x32xf32> to vector<8x8xf32>
    %203 = arith.truncf %202 : vector<8x8xf32> to vector<8x8xbf16>
    %204 = vector.extract_strided_slice %128 {offsets = [0, 24], sizes = [8, 8], strides = [1, 1]} : vector<8x32xf32> to vector<8x8xf32>
    %205 = arith.truncf %204 : vector<8x8xf32> to vector<8x8xbf16>
    %206 = vector.extract_strided_slice %129 {offsets = [0, 24], sizes = [8, 8], strides = [1, 1]} : vector<8x32xf32> to vector<8x8xf32>
    %207 = arith.truncf %206 : vector<8x8xf32> to vector<8x8xbf16>
    %cst_82 = arith.constant dense<0.000000e+00> : vector<8x8xf32>
    %208 = tpu.matmul %203, %205, %cst_82 {dimension_numbers = #tpu.dot_dimension_numbers<[1], [1], [0], [0], [0, 0, 1, 0], [], []>} : vector<8x8xbf16>, vector<8x8xbf16>, vector<8x8xf32> -> vector<8x8xf32>
    %cst_83 = arith.constant 0.353553385 : f32
    %209 = vector.broadcast %cst_83 : f32 to vector<8x8xf32>
    %210 = arith.mulf %208, %209 : vector<8x8xf32>
    %cst_84 = arith.constant dense<0xFF800000> : vector<8xf32>
    %211 = vector.multi_reduction <maximumf>, %210, %cst_84 [1] : vector<8x8xf32> to vector<8xf32>
    %212 = vector.shape_cast %211 : vector<8xf32> to vector<8x1xf32>
    %213 = vector.broadcast %212 : vector<8x1xf32> to vector<8x8xf32>
    %214 = arith.subf %210, %213 : vector<8x8xf32>
    %215 = math.exp %214 : vector<8x8xf32>
    %cst_85 = arith.constant dense<0.000000e+00> : vector<8xf32>
    %216 = vector.multi_reduction <add>, %215, %cst_85 [1] : vector<8x8xf32> to vector<8xf32>
    %217 = vector.shape_cast %216 : vector<8xf32> to vector<8x1xf32>
    %218 = tpu.reciprocal %217 {approx = true} : vector<8x1xf32> -> vector<8x1xf32>
    %219 = vector.broadcast %218 : vector<8x1xf32> to vector<8x8xf32>
    %220 = arith.mulf %215, %219 : vector<8x8xf32>
    %c1_86 = arith.constant 1 : index
    %c3_87 = arith.constant 3 : index
    %c0_88 = arith.constant 0 : index
    %c0_89 = arith.constant 0 : index
    %221 = vector.load %arg13[%c1_86, %c3_87, %c0_88, %c0_89] : memref<2x4x8x8xf32, #tpu.memory_space<vmem>>, vector<1x1x8x8xf32>
    %222 = vector.shape_cast %221 : vector<1x1x8x8xf32> to vector<8x8xf32>
    %223 = vector.shape_cast %220 : vector<8x8xf32> to vector<1x1x8x8xf32>
    tpu.vector_store %arg13[%c1_86, %c3_87, %c0_88, %c0_89], %223 {strides = array<i32>} : memref<2x4x8x8xf32, #tpu.memory_space<vmem>>, vector<1x1x8x8xf32>,
    %224 = arith.truncf %220 : vector<8x8xf32> to vector<8x8xbf16>
    %cst_90 = arith.constant dense<0.000000e+00> : vector<8x8xf32>
    %225 = tpu.matmul %224, %207, %cst_90 {dimension_numbers = #tpu.dot_dimension_numbers<[1], [0], [0], [1], [0, 0, 1, 1], [], []>} : vector<8x8xbf16>, vector<8x8xbf16>, vector<8x8xf32> -> vector<8x8xf32>
    %226 = tpu.concatenate %153, %177, %201, %225 in 1 : vector<8x8xf32>, vector<8x8xf32>, vector<8x8xf32>, vector<8x8xf32> -> vector<8x32xf32>
    %227 = tpu.concatenate %126, %226 in 0 : vector<8x32xf32>, vector<8x32xf32> -> vector<16x32xf32>
    %228 = arith.truncf %227 : vector<16x32xf32> to vector<16x32xbf16>
    %c0_91 = arith.constant 0 : index
    %c0_92 = arith.constant 0 : index
    %229 = vector.load %arg10[%c0_91, %c0_92] : memref<32x16xf32, #tpu.memory_space<vmem>>, vector<32x16xf32>
    %230 = arith.truncf %229 : vector<32x16xf32> to vector<32x16xbf16>
    %cst_93 = arith.constant dense<0.000000e+00> : vector<16x16xf32>
    %231 = tpu.matmul %228, %230, %cst_93 {dimension_numbers = #tpu.dot_dimension_numbers<[1], [0], [0], [1], [0, 0, 1, 1], [], []>} : vector<16x32xbf16>, vector<32x16xbf16>, vector<16x16xf32> -> vector<16x16xf32>
    %c0_94 = arith.constant 0 : index
    %c0_95 = arith.constant 0 : index
    %232 = vector.load %arg11[%c0_94, %c0_95] : memref<1x16xf32, #tpu.memory_space<vmem>>, vector<1x16xf32>
    %233 = vector.broadcast %232 : vector<1x16xf32> to vector<16x16xf32>
    %234 = arith.addf %231, %233 : vector<16x16xf32>
    %235 = vector.shape_cast %234 : vector<16x16xf32> to vector<2x8x16xf32>
    %c0_96 = arith.constant 0 : index
    %c0_97 = arith.constant 0 : index
    %c0_98 = arith.constant 0 : index
    %236 = vector.load %arg12[%c0_96, %c0_97, %c0_98] : memref<2x8x16xf32, #tpu.memory_space<vmem>>, vector<2x8x16xf32>
    tpu.vector_store %arg12[%c0_96, %c0_97, %c0_98], %235 {strides = array<i32>} : memref<2x8x16xf32, #tpu.memory_space<vmem>>, vector<2x8x16xf32>,
    return
  }
  func.func @transform_0(%arg0: i32) -> (i32, i32, i32) {
    %c0_i32 = arith.constant 0 : i32
    %c0_i32_0 = arith.constant 0 : i32
    %c0_i32_1 = arith.constant 0 : i32
    return %arg0, %c0_i32, %c0_i32_0 : i32, i32, i32
  }
  func.func @transform_1(%arg0: i32) -> (i32, i32, i32) {
    %c0_i32 = arith.constant 0 : i32
    %c0_i32_0 = arith.constant 0 : i32
    %c0_i32_1 = arith.constant 0 : i32
    return %arg0, %c0_i32, %c0_i32_0 : i32, i32, i32
  }
  func.func @transform_2(%arg0: i32) -> (i32, i32, i32) {
    %c0_i32 = arith.constant 0 : i32
    %c0_i32_0 = arith.constant 0 : i32
    %c0_i32_1 = arith.constant 0 : i32
    return %arg0, %c0_i32, %c0_i32_0 : i32, i32, i32
  }
  func.func @transform_3(%arg0: i32) -> (i32, i32) {
    %c0_i32 = arith.constant 0 : i32
    %c0_i32_0 = arith.constant 0 : i32
    %c0_i32_1 = arith.constant 0 : i32
    return %c0_i32, %c0_i32_0 : i32, i32
  }
  func.func @transform_4(%arg0: i32) -> (i32, i32) {
    %c0_i32 = arith.constant 0 : i32
    %c0_i32_0 = arith.constant 0 : i32
    %c0_i32_1 = arith.constant 0 : i32
    return %c0_i32, %c0_i32_0 : i32, i32
  }
  func.func @transform_5(%arg0: i32) -> (i32, i32) {
    %c0_i32 = arith.constant 0 : i32
    %c0_i32_0 = arith.constant 0 : i32
    %c0_i32_1 = arith.constant 0 : i32
    return %c0_i32, %c0_i32_0 : i32, i32
  }
  func.func @transform_6(%arg0: i32) -> (i32, i32) {
    %c0_i32 = arith.constant 0 : i32
    %c0_i32_0 = arith.constant 0 : i32
    %c0_i32_1 = arith.constant 0 : i32
    return %c0_i32, %c0_i32_0 : i32, i32
  }
  func.func @transform_7(%arg0: i32) -> (i32, i32) {
    %c0_i32 = arith.constant 0 : i32
    %c0_i32_0 = arith.constant 0 : i32
    %c0_i32_1 = arith.constant 0 : i32
    return %c0_i32, %c0_i32_0 : i32, i32
  }
  func.func @transform_8(%arg0: i32) -> (i32, i32) {
    %c0_i32 = arith.constant 0 : i32
    %c0_i32_0 = arith.constant 0 : i32
    %c0_i32_1 = arith.constant 0 : i32
    return %c0_i32, %c0_i32_0 : i32, i32
  }
  func.func @transform_9(%arg0: i32) -> (i32, i32) {
    %c0_i32 = arith.constant 0 : i32
    %c0_i32_0 = arith.constant 0 : i32
    %c0_i32_1 = arith.constant 0 : i32
    return %c0_i32, %c0_i32_0 : i32, i32
  }
  func.func @transform_10(%arg0: i32) -> (i32, i32) {
    %c0_i32 = arith.constant 0 : i32
    %c0_i32_0 = arith.constant 0 : i32
    %c0_i32_1 = arith.constant 0 : i32
    return %c0_i32, %c0_i32_0 : i32, i32
  }
  func.func @transform_11(%arg0: i32) -> (i32, i32, i32) {
    %c0_i32 = arith.constant 0 : i32
    %c0_i32_0 = arith.constant 0 : i32
    %c0_i32_1 = arith.constant 0 : i32
    return %arg0, %c0_i32, %c0_i32_0 : i32, i32, i32
  }
  func.func @transform_12(%arg0: i32) -> (i32, i32, i32, i32) {
    %c0_i32 = arith.constant 0 : i32
    %c0_i32_0 = arith.constant 0 : i32
    %c0_i32_1 = arith.constant 0 : i32
    %c0_i32_2 = arith.constant 0 : i32
    return %arg0, %c0_i32, %c0_i32_0, %c0_i32_1 : i32, i32, i32, i32
  }
}

</mosaic_0001>

<llo_original>
// kernel: tpu_custom_call.1
$region0: #{tpu_custom_call.1}
  #allocation0 [shape = 'u32[]', space=smem, size = 0x4, offset = 0x4, fixed_abs, tag = 'smem constant byte address 0x4 - core index']
  #allocation1 [shape = 'u32[144,128]{1,0:T(1,128)}', space=vmem, size = 0x12000, scoped, tag = 'internal scratch']
  %s0 = inlined_call_operand.vmem [shape: f32[2,8,16], index: 0, kind: input, shape index: {}]
  %s1 = inlined_call_operand.vmem [shape: f32[2,8,16], index: 1, kind: input, shape index: {}]
  %s2 = inlined_call_operand.vmem [shape: f32[2,8,16], index: 2, kind: input, shape index: {}]
  %s3 = inlined_call_operand.hbm [shape: f32[16,32], index: 3, kind: input, shape index: {}]
  %s4 = inlined_call_operand.vmem [shape: f32[1,32], index: 4, kind: input, shape index: {}]
  %s5 = inlined_call_operand.hbm [shape: f32[16,32], index: 5, kind: input, shape index: {}]
  %s6 = inlined_call_operand.vmem [shape: f32[1,32], index: 6, kind: input, shape index: {}]
  %s7 = inlined_call_operand.hbm [shape: f32[16,32], index: 7, kind: input, shape index: {}]
  %s8 = inlined_call_operand.vmem [shape: f32[1,32], index: 8, kind: input, shape index: {}]
  %s9 = inlined_call_operand.vmem [shape: f32[32,16], index: 9, kind: input, shape index: {}]
  %s10 = inlined_call_operand.vmem [shape: f32[1,16], index: 10, kind: input, shape index: {}]
  %s11 = inlined_call_operand.hbm [shape: f32[2,8,16], index: 11, kind: output, shape index: {0}]
  %s12 = inlined_call_operand.hbm [shape: f32[2,4,8,8], index: 12, kind: output, shape index: {1}]
  %13 = xla_tuple %s11, %s12
  %s14 = sld [smem:[#allocation0]]
  $region74: #{tpu_custom_call.1} parent=0
    _
  %s16 = ssub.s32 1, %s14
  %s17 = scalar_select 0, %s16, %s14
  $region1: #{tpu_custom_call.1} parent=0
    #allocation2 [shape = 'u8[8192]{0}', space=vmem, size = 0x2000, scoped, tag = 'input window, operand 3, single buffered']
    #allocation3 [shape = 's32[1]{0}', space=sflag, size = 0x4, scoped, tag = 'scoped memory for tpu_custom_call.1']
    #allocation4 [shape = 's32[1]{0}', space=sflag, size = 0x4, scoped, tag = 'scoped memory for tpu_custom_call.1']
    #allocation5 [shape = 'u8[8192]{0}', space=vmem, size = 0x2000, scoped, tag = 'input window, operand 5, single buffered']
    #allocation6 [shape = 's32[1]{0}', space=sflag, size = 0x4, scoped, tag = 'scoped memory for tpu_custom_call.1']
    #allocation7 [shape = 'u8[8192]{0}', space=vmem, size = 0x2000, scoped, tag = 'input window, operand 7, single buffered']
    #allocation8 [shape = 'u8[8192]{0}', space=vmem, size = 0x2000, scoped, tag = 'output window, operand 0, single buffered']
    #allocation9 [shape = 'u8[32768]{0}', space=vmem, size = 0x8000, scoped, tag = 'output window, operand 1, single buffered']
    #allocation10 [shape = 's32[1]{0}', space=sflag, size = 0x4, scoped, tag = 'scoped memory for tpu_custom_call.1']
    %18 = vsyncpa [#allocation3], 0
    %19 = vsyncpa [#allocation6], 0
    %20 = vsyncpa [#allocation4], 0
    %21 = vsyncpa [#allocation10], 0
    // Predicated region
    $region2: #{tpu_custom_call.1} parent=1 // pred_check
      _
    $region3: #{tpu_custom_call.1} parent=1 // pred_check_branch
      %23 = sbr.rel (0) target = $region5
    $region4: #{tpu_custom_call.1} parent=1 // pred_region
      _
    $region5: #{tpu_custom_call.1} parent=1 // pred_fallthru
      _
    // Predicated region
    $region6: #{tpu_custom_call.1} parent=1 // pred_check
      _
    $region7: #{tpu_custom_call.1} parent=1 // pred_check_branch
      %25 = sbr.rel (0) target = $region9
    $region8: #{tpu_custom_call.1} parent=1 // pred_region
      _
    $region9: #{tpu_custom_call.1} parent=1 // pred_fallthru
      _
    // Predicated region
    $region10: #{tpu_custom_call.1} parent=1 // pred_check
      _
    $region11: #{tpu_custom_call.1} parent=1 // pred_check_branch
      %27 = sbr.rel (0) target = $region13
    $region12: #{tpu_custom_call.1} parent=1 // pred_region
      _
    $region13: #{tpu_custom_call.1} parent=1 // pred_fallthru
      _
    // Predicated region
    $region14: #{tpu_custom_call.1} parent=1 // pred_check
      _
    $region15: #{tpu_custom_call.1} parent=1 // pred_check_branch
      %29 = sbr.rel (0) target = $region17
    $region16: #{tpu_custom_call.1} parent=1 // pred_region
      %s31 = ssub.s32 256, 256
      %32 = vsyncadd [#allocation3], %s31
      %s33 = sshll.u32 [#allocation2], 4
      %s34 = int_to_ptr.vmem [resolvable:$true] %s33
      %39 = dma.hbm_to_vmem [thread:$0]  %s3, 256, %s34, [#allocation3], 128, 128, 8
    $region17: #{tpu_custom_call.1} parent=1 // pred_fallthru
      _
    // Predicated region
    $region18: #{tpu_custom_call.1} parent=1 // pred_check
      _
    $region19: #{tpu_custom_call.1} parent=1 // pred_check_branch
      %41 = sbr.rel (0) target = $region21
    $region20: #{tpu_custom_call.1} parent=1 // pred_region
      _
    $region21: #{tpu_custom_call.1} parent=1 // pred_fallthru
      _
    // Predicated region
    $region22: #{tpu_custom_call.1} parent=1 // pred_check
      _
    $region23: #{tpu_custom_call.1} parent=1 // pred_check_branch
      %43 = sbr.rel (0) target = $region25
    $region24: #{tpu_custom_call.1} parent=1 // pred_region
      %s45 = ssub.s32 256, 256
      %46 = vsyncadd [#allocation6], %s45
      %s47 = sshll.u32 [#allocation5], 4
      %s48 = int_to_ptr.vmem [resolvable:$true] %s47
      %53 = dma.hbm_to_vmem [thread:$0]  %s5, 256, %s48, [#allocation6], 128, 128, 8
    $region25: #{tpu_custom_call.1} parent=1 // pred_fallthru
      _
    // Predicated region
    $region26: #{tpu_custom_call.1} parent=1 // pred_check
      _
    $region27: #{tpu_custom_call.1} parent=1 // pred_check_branch
      %55 = sbr.rel (0) target = $region29
    $region28: #{tpu_custom_call.1} parent=1 // pred_region
      _
    $region29: #{tpu_custom_call.1} parent=1 // pred_fallthru
      _
    // Predicated region
    $region30: #{tpu_custom_call.1} parent=1 // pred_check
      _
    $region31: #{tpu_custom_call.1} parent=1 // pred_check_branch
      %57 = sbr.rel (0) target = $region33
    $region32: #{tpu_custom_call.1} parent=1 // pred_region
      %s59 = ssub.s32 256, 256
      %60 = vsyncadd [#allocation6], %s59
      %s61 = sshll.u32 [#allocation7], 4
      %s62 = int_to_ptr.vmem [resolvable:$true] %s61
      %67 = dma.hbm_to_vmem [thread:$0]  %s7, 256, %s62, [#allocation6], 128, 128, 8
    $region33: #{tpu_custom_call.1} parent=1 // pred_fallthru
      _
    // Predicated region
    $region34: #{tpu_custom_call.1} parent=1 // pred_check
      _
    $region35: #{tpu_custom_call.1} parent=1 // pred_check_branch
      %69 = sbr.rel (0) target = $region37
    $region36: #{tpu_custom_call.1} parent=1 // pred_region
      _
    $region37: #{tpu_custom_call.1} parent=1 // pred_fallthru
      _
    // Predicated region
    $region38: #{tpu_custom_call.1} parent=1 // pred_check
      _
    $region39: #{tpu_custom_call.1} parent=1 // pred_check_branch
      %71 = sbr.rel (0) target = $region41
    $region40: #{tpu_custom_call.1} parent=1 // pred_region
      _
    $region41: #{tpu_custom_call.1} parent=1 // pred_fallthru
      _
    // Predicated region
    $region42: #{tpu_custom_call.1} parent=1 // pred_check
      _
    $region43: #{tpu_custom_call.1} parent=1 // pred_check_branch
      %73 = sbr.rel (0) target = $region45
    $region44: #{tpu_custom_call.1} parent=1 // pred_region
      _
    $region45: #{tpu_custom_call.1} parent=1 // pred_fallthru
      _
    // Predicated region
    $region46: #{tpu_custom_call.1} parent=1 // pred_check
      _
    $region47: #{tpu_custom_call.1} parent=1 // pred_check_branch
      %75 = sbr.rel (0) target = $region49
    $region48: #{tpu_custom_call.1} parent=1 // pred_region
      %76 = dma.done [#allocation3], 256
    $region49: #{tpu_custom_call.1} parent=1 // pred_fallthru
      _
    // Predicated region
    $region50: #{tpu_custom_call.1} parent=1 // pred_check
      _
    $region51: #{tpu_custom_call.1} parent=1 // pred_check_branch
      %78 = sbr.rel (0) target = $region53
    $region52: #{tpu_custom_call.1} parent=1 // pred_region
      %79 = dma.done [#allocation6], 256
    $region53: #{tpu_custom_call.1} parent=1 // pred_fallthru
      _
    // Predicated region
    $region54: #{tpu_custom_call.1} parent=1 // pred_check
      _
    $region55: #{tpu_custom_call.1} parent=1 // pred_check_branch
      %81 = sbr.rel (0) target = $region57
    $region56: #{tpu_custom_call.1} parent=1 // pred_region
      %82 = dma.done [#allocation6], 256
    $region57: #{tpu_custom_call.1} parent=1 // pred_fallthru
      _
    %v84 = vld [vmem:[%s0] sm:$0xff]
    %v85 = vld [vmem:[%s0 + $0x8] sm:$0xff]
    %v86 = vpack.c.bf16 %v85, %v84
    %v87 = vld [vmem:[%s1] sm:$0xff]
    %v88 = vld [vmem:[%s1 + $0x8] sm:$0xff]
    %v89 = vpack.c.bf16 %v88, %v87
    %v90 = vld [vmem:[%s2] sm:$0xff]
    %v91 = vld [vmem:[%s2 + $0x8] sm:$0xff]
    %v92 = vpack.c.bf16 %v91, %v90
    %v93 = vld [vmem:[#allocation2] sm:$0xff]
    %v94 = vld [vmem:[#allocation2 + $0x8] sm:$0xff]
    %v95 = vpack.c.bf16 %v94, %v93
    %v96 = vld [vmem:[#allocation5] sm:$0xff]
    %v97 = vld [vmem:[#allocation5 + $0x8] sm:$0xff]
    %v98 = vpack.c.bf16 %v97, %v96
    %v99 = vld [vmem:[#allocation7] sm:$0xff]
    %v100 = vld [vmem:[#allocation7 + $0x8] sm:$0xff]
    %v101 = vpack.c.bf16 %v100, %v99
    %v102 = vld [vmem:[%s4] sm:$0x1]
    %v104 = vlaneseq
    %v105 = vshrl.u32 %v104, 7
    %v106 = vsub.s32 0, %v105
    %v107 = vrot.slane %v102, %v106
    %vm109 = vcmask 130048
    %v111 = vsel %vm109, %v86, 0
    %113 = vmatprep.subr.bf16.mxu0 0
    %114 = vmatpush1.bf16.msra.mxu0 %v95
    %115 = vmatprep.subr.bf16.mxu0 0
    %116 = vmatpush1.bf16.msra.mxu0 0
    %117 = vmatprep.subr.bf16.mxu0 0
    %118 = vmatpush1.bf16.msra.mxu0 0
    %119 = vmatprep.subr.bf16.mxu0 0
    %120 = vmatpush1.bf16.msra.mxu0 0
    %121 = vmatprep.subr.bf16.mxu0 0
    %122 = vmatpush1.bf16.msra.mxu0 0
    %123 = vmatprep.subr.bf16.mxu0 0
    %124 = vmatpush1.bf16.msra.mxu0 0
    %125 = vmatprep.subr.bf16.mxu0 0
    %126 = vmatpush1.bf16.msra.mxu0 0
    %127 = vmatprep.subr.bf16.mxu0 0
    %128 = vmatpush1.bf16.msra.mxu0 0
    %129 = vmatprep.subr.bf16.mxu0 0
    %130 = vmatpush1.bf16.msra.mxu0 0
    %131 = vmatprep.subr.bf16.mxu0 0
    %132 = vmatpush1.bf16.msra.mxu0 0
    %133 = vmatprep.subr.bf16.mxu0 0
    %134 = vmatpush1.bf16.msra.mxu0 0
    %135 = vmatprep.subr.bf16.mxu0 0
    %136 = vmatpush1.bf16.msra.mxu0 0
    %137 = vmatprep.subr.bf16.mxu0 0
    %138 = vmatpush1.bf16.msra.mxu0 0
    %139 = vmatprep.subr.bf16.mxu0 0
    %140 = vmatpush1.bf16.msra.mxu0 0
    %141 = vmatprep.subr.bf16.mxu0 0
    %142 = vmatpush1.bf16.msra.mxu0 0
    %143 = vmatprep.subr.bf16.mxu0 0
    %144 = vmatpush1.bf16.msra.mxu0 0
    %145 = vmatprep.mubr.bf16.mxu0 0
    %146 = vmatmul.mubr.bf16.gmra.mrb[0].mxu0 %v111
    %v147 = vpop.f32.mrb[0].mxu0
    %v148 = vadd.f32 %v107, %v147
    %v149 = vpop.f32.mrb[0].mxu0
    %v150 = vpop.f32.mrb[0].mxu0
    %v151 = vadd.f32 %v107, %v150
    %v152 = vpop.f32.mrb[0].mxu0
    %153 = vdwg.mxu0
    %v154 = vld [vmem:[%s6] sm:$0x1]
    %v156 = vlaneseq
    %v157 = vshrl.u32 %v156, 7
    %v158 = vsub.s32 0, %v157
    %v159 = vrot.slane %v154, %v158
    %v162 = vsel %vm109, %v89, 0
    %164 = vmatprep.subr.bf16.mxu0 0
    %165 = vmatpush1.bf16.msra.mxu0 %v98
    %166 = vmatprep.subr.bf16.mxu0 0
    %167 = vmatpush1.bf16.msra.mxu0 0
    %168 = vmatprep.subr.bf16.mxu0 0
    %169 = vmatpush1.bf16.msra.mxu0 0
    %170 = vmatprep.subr.bf16.mxu0 0
    %171 = vmatpush1.bf16.msra.mxu0 0
    %172 = vmatprep.subr.bf16.mxu0 0
    %173 = vmatpush1.bf16.msra.mxu0 0
    %174 = vmatprep.subr.bf16.mxu0 0
    %175 = vmatpush1.bf16.msra.mxu0 0
    %176 = vmatprep.subr.bf16.mxu0 0
    %177 = vmatpush1.bf16.msra.mxu0 0
    %178 = vmatprep.subr.bf16.mxu0 0
    %179 = vmatpush1.bf16.msra.mxu0 0
    %180 = vmatprep.subr.bf16.mxu0 0
    %181 = vmatpush1.bf16.msra.mxu0 0
    %182 = vmatprep.subr.bf16.mxu0 0
    %183 = vmatpush1.bf16.msra.mxu0 0
    %184 = vmatprep.subr.bf16.mxu0 0
    %185 = vmatpush1.bf16.msra.mxu0 0
    %186 = vmatprep.subr.bf16.mxu0 0
    %187 = vmatpush1.bf16.msra.mxu0 0
    %188 = vmatprep.subr.bf16.mxu0 0
    %189 = vmatpush1.bf16.msra.mxu0 0
    %190 = vmatprep.subr.bf16.mxu0 0
    %191 = vmatpush1.bf16.msra.mxu0 0
    %192 = vmatprep.subr.bf16.mxu0 0
    %193 = vmatpush1.bf16.msra.mxu0 0
    %194 = vmatprep.subr.bf16.mxu0 0
    %195 = vmatpush1.bf16.msra.mxu0 0
    %196 = vmatprep.mubr.bf16.mxu0 0
    %197 = vmatmul.mubr.bf16.gmra.mrb[0].mxu0 %v162
    %v198 = vpop.f32.mrb[0].mxu0
    %v199 = vadd.f32 %v159, %v198
    %v200 = vpop.f32.mrb[0].mxu0
    %v201 = vpop.f32.mrb[0].mxu0
    %v202 = vadd.f32 %v159, %v201
    %v203 = vpop.f32.mrb[0].mxu0
    %204 = vdwg.mxu0
    %v205 = vld [vmem:[%s8] sm:$0x1]
    %v207 = vlaneseq
    %v208 = vshrl.u32 %v207, 7
    %v209 = vsub.s32 0, %v208
    %v210 = vrot.slane %v205, %v209
    %v213 = vsel %vm109, %v92, 0
    %215 = vmatprep.subr.bf16.mxu0 0
    %216 = vmatpush1.bf16.msra.mxu0 %v101
    %217 = vmatprep.subr.bf16.mxu0 0
    %218 = vmatpush1.bf16.msra.mxu0 0
    %219 = vmatprep.subr.bf16.mxu0 0
    %220 = vmatpush1.bf16.msra.mxu0 0
    %221 = vmatprep.subr.bf16.mxu0 0
    %222 = vmatpush1.bf16.msra.mxu0 0
    %223 = vmatprep.subr.bf16.mxu0 0
    %224 = vmatpush1.bf16.msra.mxu0 0
    %225 = vmatprep.subr.bf16.mxu0 0
    %226 = vmatpush1.bf16.msra.mxu0 0
    %227 = vmatprep.subr.bf16.mxu0 0
    %228 = vmatpush1.bf16.msra.mxu0 0
    %229 = vmatprep.subr.bf16.mxu0 0
    %230 = vmatpush1.bf16.msra.mxu0 0
    %231 = vmatprep.subr.bf16.mxu0 0
    %232 = vmatpush1.bf16.msra.mxu0 0
    %233 = vmatprep.subr.bf16.mxu0 0
    %234 = vmatpush1.bf16.msra.mxu0 0
    %235 = vmatprep.subr.bf16.mxu0 0
    %236 = vmatpush1.bf16.msra.mxu0 0
    %237 = vmatprep.subr.bf16.mxu0 0
    %238 = vmatpush1.bf16.msra.mxu0 0
    %239 = vmatprep.subr.bf16.mxu0 0
    %240 = vmatpush1.bf16.msra.mxu0 0
    %241 = vmatprep.subr.bf16.mxu0 0
    %242 = vmatpush1.bf16.msra.mxu0 0
    %243 = vmatprep.subr.bf16.mxu0 0
    %244 = vmatpush1.bf16.msra.mxu0 0
    %245 = vmatprep.subr.bf16.mxu0 0
    %246 = vmatpush1.bf16.msra.mxu0 0
    %247 = vmatprep.mubr.bf16.mxu0 0
    %248 = vmatmul.mubr.bf16.gmra.mrb[0].mxu0 %v213
    %v249 = vpop.f32.mrb[0].mxu0
    %v250 = vadd.f32 %v210, %v249
    %v251 = vpop.f32.mrb[0].mxu0
    %v252 = vpop.f32.mrb[0].mxu0
    %v253 = vadd.f32 %v210, %v252
    %v254 = vpop.f32.mrb[0].mxu0
    %255 = vdwg.mxu0
    %v256 = vpack.c.bf16 %v148, %v148
    %v257 = vpack.c.bf16 %v199, %v199
    %v258 = vpack.c.bf16 %v250, %v250
    %vm259 = vcmask 64512
    %v261 = vsel %vm259, %v256, 0
    %v264 = vsel %vm259, %v257, 0
    %266 = vmatprep.subr.bf16.mxu0 0
    %267 = vmatpush1.bf16.xpose.msra.mxu0 %v264
    %268 = vmatprep.subr.bf16.mxu0 0
    %269 = vmatpush1.bf16.xpose.msra.mxu0 0
    %270 = vmatprep.subr.bf16.mxu0 0
    %271 = vmatpush1.bf16.xpose.msra.mxu0 0
    %272 = vmatprep.subr.bf16.mxu0 0
    %273 = vmatpush1.bf16.xpose.msra.mxu0 0
    %274 = vmatprep.subr.bf16.mxu0 0
    %275 = vmatpush1.bf16.xpose.msra.mxu0 0
    %276 = vmatprep.subr.bf16.mxu0 0
    %277 = vmatpush1.bf16.xpose.msra.mxu0 0
    %278 = vmatprep.subr.bf16.mxu0 0
    %279 = vmatpush1.bf16.xpose.msra.mxu0 0
    %280 = vmatprep.subr.bf16.mxu0 0
    %281 = vmatpush1.bf16.xpose.msra.mxu0 0
    %282 = vmatprep.subr.bf16.mxu0 0
    %283 = vmatpush1.bf16.xpose.msra.mxu0 0
    %284 = vmatprep.subr.bf16.mxu0 0
    %285 = vmatpush1.bf16.xpose.msra.mxu0 0
    %286 = vmatprep.subr.bf16.mxu0 0
    %287 = vmatpush1.bf16.xpose.msra.mxu0 0
    %288 = vmatprep.subr.bf16.mxu0 0
    %289 = vmatpush1.bf16.xpose.msra.mxu0 0
    %290 = vmatprep.subr.bf16.mxu0 0
    %291 = vmatpush1.bf16.xpose.msra.mxu0 0
    %292 = vmatprep.subr.bf16.mxu0 0
    %293 = vmatpush1.bf16.xpose.msra.mxu0 0
    %294 = vmatprep.subr.bf16.mxu0 0
    %295 = vmatpush1.bf16.xpose.msra.mxu0 0
    %296 = vmatprep.subr.bf16.mxu0 0
    %297 = vmatpush1.bf16.xpose.msra.mxu0 0
    %298 = vmatprep.mubr.bf16.mxu0 0
    %299 = vmatmul.mubr.bf16.gmra.mrb[0].mxu0 %v261
    %v300 = vpop.f32.mrb[0].mxu0
    %v301 = vadd.f32 0.0, %v300
    %v302 = vpop.f32.mrb[0].mxu0
    %v303 = vpop.f32.mrb[0].mxu0
    %v304 = vpop.f32.mrb[0].mxu0
    %305 = vdwg.mxu0
    %v306 = vmul.f32 %v301, 0.35355338
    %v307 = vsel %vm259, %v306, -inf
    %308 = vmax.xlane.f32.xlu0 %v307
    %v309 = vpop.xlane.xlu0 %308
    %v310 = vsub.f32 %v306, %v309
    %v311 = vmul.f32 %v310, 1.442695
    %v312 = vpow.pop %v311
    %v313 = vsel %vm259, %v312, 0.0
    %314 = vadd.xlane.f32.xlu0 %v313
    %v315 = vpop.xlane.xlu0 %314
    %v316 = vrcp.pop %v315
    %v317 = vmul.f32 %v312, %v316
    %318 = vst.msk [vmem:[#allocation9] sm:$0xff] %vm259, %v317
    %v319 = vpack.c.bf16 %v317, %v317
    %v321 = vsel %vm259, %v319, 0
    %vm323 = vcmask 1043456
    %v325 = vsel %vm323, %v258, 0
    %327 = vmatprep.subr.bf16.mxu0 0
    %328 = vmatpush1.bf16.msra.mxu0 %v325
    %329 = vmatprep.subr.bf16.mxu0 0
    %330 = vmatpush1.bf16.msra.mxu0 0
    %331 = vmatprep.subr.bf16.mxu0 0
    %332 = vmatpush1.bf16.msra.mxu0 0
    %333 = vmatprep.subr.bf16.mxu0 0
    %334 = vmatpush1.bf16.msra.mxu0 0
    %335 = vmatprep.subr.bf16.mxu0 0
    %336 = vmatpush1.bf16.msra.mxu0 0
    %337 = vmatprep.subr.bf16.mxu0 0
    %338 = vmatpush1.bf16.msra.mxu0 0
    %339 = vmatprep.subr.bf16.mxu0 0
    %340 = vmatpush1.bf16.msra.mxu0 0
    %341 = vmatprep.subr.bf16.mxu0 0
    %342 = vmatpush1.bf16.msra.mxu0 0
    %343 = vmatprep.subr.bf16.mxu0 0
    %344 = vmatpush1.bf16.msra.mxu0 0
    %345 = vmatprep.subr.bf16.mxu0 0
    %346 = vmatpush1.bf16.msra.mxu0 0
    %347 = vmatprep.subr.bf16.mxu0 0
    %348 = vmatpush1.bf16.msra.mxu0 0
    %349 = vmatprep.subr.bf16.mxu0 0
    %350 = vmatpush1.bf16.msra.mxu0 0
    %351 = vmatprep.subr.bf16.mxu0 0
    %352 = vmatpush1.bf16.msra.mxu0 0
    %353 = vmatprep.subr.bf16.mxu0 0
    %354 = vmatpush1.bf16.msra.mxu0 0
    %355 = vmatprep.subr.bf16.mxu0 0
    %356 = vmatpush1.bf16.msra.mxu0 0
    %357 = vmatprep.subr.bf16.mxu0 0
    %358 = vmatpush1.bf16.msra.mxu0 0
    %359 = vmatprep.mubr.bf16.mxu0 0
    %360 = vmatmul.mubr.bf16.gmra.mrb[0].mxu0 %v321
    %v361 = vpop.f32.mrb[0].mxu0
    %v362 = vadd.f32 0.0, %v361
    %v363 = vpop.f32.mrb[0].mxu0
    %v364 = vpop.f32.mrb[0].mxu0
    %v365 = vpop.f32.mrb[0].mxu0
    %366 = vdwg.mxu0
    %368 = vrot.lane.b32.xlu0 %v256, 120
    %v369 = vpop.permute.xlu0 %368
    %371 = vrot.lane.b32.xlu0 %v257, 120
    %v372 = vpop.permute.xlu0 %371
    %v374 = vsel %vm259, %v369, 0
    %v377 = vsel %vm259, %v372, 0
    %379 = vmatprep.subr.bf16.mxu0 0
    %380 = vmatpush1.bf16.xpose.msra.mxu0 %v377
    %381 = vmatprep.subr.bf16.mxu0 0
    %382 = vmatpush1.bf16.xpose.msra.mxu0 0
    %383 = vmatprep.subr.bf16.mxu0 0
    %384 = vmatpush1.bf16.xpose.msra.mxu0 0
    %385 = vmatprep.subr.bf16.mxu0 0
    %386 = vmatpush1.bf16.xpose.msra.mxu0 0
    %387 = vmatprep.subr.bf16.mxu0 0
    %388 = vmatpush1.bf16.xpose.msra.mxu0 0
    %389 = vmatprep.subr.bf16.mxu0 0
    %390 = vmatpush1.bf16.xpose.msra.mxu0 0
    %391 = vmatprep.subr.bf16.mxu0 0
    %392 = vmatpush1.bf16.xpose.msra.mxu0 0
    %393 = vmatprep.subr.bf16.mxu0 0
    %394 = vmatpush1.bf16.xpose.msra.mxu0 0
    %395 = vmatprep.subr.bf16.mxu0 0
    %396 = vmatpush1.bf16.xpose.msra.mxu0 0
    %397 = vmatprep.subr.bf16.mxu0 0
    %398 = vmatpush1.bf16.xpose.msra.mxu0 0
    %399 = vmatprep.subr.bf16.mxu0 0
    %400 = vmatpush1.bf16.xpose.msra.mxu0 0
    %401 = vmatprep.subr.bf16.mxu0 0
    %402 = vmatpush1.bf16.xpose.msra.mxu0 0
    %403 = vmatprep.subr.bf16.mxu0 0
    %404 = vmatpush1.bf16.xpose.msra.mxu0 0
    %405 = vmatprep.subr.bf16.mxu0 0
    %406 = vmatpush1.bf16.xpose.msra.mxu0 0
    %407 = vmatprep.subr.bf16.mxu0 0
    %408 = vmatpush1.bf16.xpose.msra.mxu0 0
    %409 = vmatprep.subr.bf16.mxu0 0
    %410 = vmatpush1.bf16.xpose.msra.mxu0 0
    %411 = vmatprep.mubr.bf16.mxu0 0
    %412 = vmatmul.mubr.bf16.gmra.mrb[0].mxu0 %v374
    %v413 = vpop.f32.mrb[0].mxu0
    %v414 = vadd.f32 0.0, %v413
    %v415 = vpop.f32.mrb[0].mxu0
    %v416 = vpop.f32.mrb[0].mxu0
    %v417 = vpop.f32.mrb[0].mxu0
    %418 = vdwg.mxu0
    %v419 = vmul.f32 %v414, 0.35355338
    %v420 = vsel %vm259, %v419, -inf
    %421 = vmax.xlane.f32.xlu0 %v420
    %v422 = vpop.xlane.xlu0 %421
    %v423 = vsub.f32 %v419, %v422
    %v424 = vmul.f32 %v423, 1.442695
    %v425 = vpow.pop %v424
    %v426 = vsel %vm259, %v425, 0.0
    %427 = vadd.xlane.f32.xlu0 %v426
    %v428 = vpop.xlane.xlu0 %427
    %v429 = vrcp.pop %v428
    %v430 = vmul.f32 %v425, %v429
    %s431 = scalar_lea.vmem [#allocation9], 8
    %432 = vst.msk [vmem:[%s431] sm:$0xff] %vm259, %v430
    %v433 = vpack.c.bf16 %v430, %v430
    %435 = vrot.lane.b32.xlu0 %v258, 120
    %v436 = vpop.permute.xlu0 %435
    %v438 = vsel %vm259, %v433, 0
    %v441 = vsel %vm323, %v436, 0
    %443 = vmatprep.subr.bf16.mxu0 0
    %444 = vmatpush1.bf16.msra.mxu0 %v441
    %445 = vmatprep.subr.bf16.mxu0 0
    %446 = vmatpush1.bf16.msra.mxu0 0
    %447 = vmatprep.subr.bf16.mxu0 0
    %448 = vmatpush1.bf16.msra.mxu0 0
    %449 = vmatprep.subr.bf16.mxu0 0
    %450 = vmatpush1.bf16.msra.mxu0 0
    %451 = vmatprep.subr.bf16.mxu0 0
    %452 = vmatpush1.bf16.msra.mxu0 0
    %453 = vmatprep.subr.bf16.mxu0 0
    %454 = vmatpush1.bf16.msra.mxu0 0
    %455 = vmatprep.subr.bf16.mxu0 0
    %456 = vmatpush1.bf16.msra.mxu0 0
    %457 = vmatprep.subr.bf16.mxu0 0
    %458 = vmatpush1.bf16.msra.mxu0 0
    %459 = vmatprep.subr.bf16.mxu0 0
    %460 = vmatpush1.bf16.msra.mxu0 0
    %461 = vmatprep.subr.bf16.mxu0 0
    %462 = vmatpush1.bf16.msra.mxu0 0
    %463 = vmatprep.subr.bf16.mxu0 0
    %464 = vmatpush1.bf16.msra.mxu0 0
    %465 = vmatprep.subr.bf16.mxu0 0
    %466 = vmatpush1.bf16.msra.mxu0 0
    %467 = vmatprep.subr.bf16.mxu0 0
    %468 = vmatpush1.bf16.msra.mxu0 0
    %469 = vmatprep.subr.bf16.mxu0 0
    %470 = vmatpush1.bf16.msra.mxu0 0
    %471 = vmatprep.subr.bf16.mxu0 0
    %472 = vmatpush1.bf16.msra.mxu0 0
    %473 = vmatprep.subr.bf16.mxu0 0
    %474 = vmatpush1.bf16.msra.mxu0 0
    %475 = vmatprep.mubr.bf16.mxu0 0
    %476 = vmatmul.mubr.bf16.gmra.mrb[0].mxu0 %v438
    %v477 = vpop.f32.mrb[0].mxu0
    %v478 = vadd.f32 0.0, %v477
    %v479 = vpop.f32.mrb[0].mxu0
    %v480 = vpop.f32.mrb[0].mxu0
    %v481 = vpop.f32.mrb[0].mxu0
    %482 = vdwg.mxu0
    %483 = vrot.lane.b32.xlu0 %v256, 112
    %v484 = vpop.permute.xlu0 %483
    %485 = vrot.lane.b32.xlu0 %v257, 112
    %v486 = vpop.permute.xlu0 %485
    %v488 = vsel %vm259, %v484, 0
    %v491 = vsel %vm259, %v486, 0
    %493 = vmatprep.subr.bf16.mxu0 0
    %494 = vmatpush1.bf16.xpose.msra.mxu0 %v491
    %495 = vmatprep.subr.bf16.mxu0 0
    %496 = vmatpush1.bf16.xpose.msra.mxu0 0
    %497 = vmatprep.subr.bf16.mxu0 0
    %498 = vmatpush1.bf16.xpose.msra.mxu0 0
    %499 = vmatprep.subr.bf16.mxu0 0
    %500 = vmatpush1.bf16.xpose.msra.mxu0 0
    %501 = vmatprep.subr.bf16.mxu0 0
    %502 = vmatpush1.bf16.xpose.msra.mxu0 0
    %503 = vmatprep.subr.bf16.mxu0 0
    %504 = vmatpush1.bf16.xpose.msra.mxu0 0
    %505 = vmatprep.subr.bf16.mxu0 0
    %506 = vmatpush1.bf16.xpose.msra.mxu0 0
    %507 = vmatprep.subr.bf16.mxu0 0
    %508 = vmatpush1.bf16.xpose.msra.mxu0 0
    %509 = vmatprep.subr.bf16.mxu0 0
    %510 = vmatpush1.bf16.xpose.msra.mxu0 0
    %511 = vmatprep.subr.bf16.mxu0 0
    %512 = vmatpush1.bf16.xpose.msra.mxu0 0
    %513 = vmatprep.subr.bf16.mxu0 0
    %514 = vmatpush1.bf16.xpose.msra.mxu0 0
    %515 = vmatprep.subr.bf16.mxu0 0
    %516 = vmatpush1.bf16.xpose.msra.mxu0 0
    %517 = vmatprep.subr.bf16.mxu0 0
    %518 = vmatpush1.bf16.xpose.msra.mxu0 0
    %519 = vmatprep.subr.bf16.mxu0 0
    %520 = vmatpush1.bf16.xpose.msra.mxu0 0
    %521 = vmatprep.subr.bf16.mxu0 0
    %522 = vmatpush1.bf16.xpose.msra.mxu0 0
    %523 = vmatprep.subr.bf16.mxu0 0
    %524 = vmatpush1.bf16.xpose.msra.mxu0 0
    %525 = vmatprep.mubr.bf16.mxu0 0
    %526 = vmatmul.mubr.bf16.gmra.mrb[0].mxu0 %v488
    %v527 = vpop.f32.mrb[0].mxu0
    %v528 = vadd.f32 0.0, %v527
    %v529 = vpop.f32.mrb[0].mxu0
    %v530 = vpop.f32.mrb[0].mxu0
    %v531 = vpop.f32.mrb[0].mxu0
    %532 = vdwg.mxu0
    %v533 = vmul.f32 %v528, 0.35355338
    %v534 = vsel %vm259, %v533, -inf
    %535 = vmax.xlane.f32.xlu0 %v534
    %v536 = vpop.xlane.xlu0 %535
    %v537 = vsub.f32 %v533, %v536
    %v538 = vmul.f32 %v537, 1.442695
    %v539 = vpow.pop %v538
    %v540 = vsel %vm259, %v539, 0.0
    %541 = vadd.xlane.f32.xlu0 %v540
    %v542 = vpop.xlane.xlu0 %541
    %v543 = vrcp.pop %v542
    %v544 = vmul.f32 %v539, %v543
    %s545 = scalar_lea.vmem [#allocation9], 16
    %546 = vst.msk [vmem:[%s545] sm:$0xff] %vm259, %v544
    %v547 = vpack.c.bf16 %v544, %v544
    %548 = vrot.lane.b32.xlu0 %v258, 112
    %v549 = vpop.permute.xlu0 %548
    %v551 = vsel %vm259, %v547, 0
    %v554 = vsel %vm323, %v549, 0
    %556 = vmatprep.subr.bf16.mxu0 0
    %557 = vmatpush1.bf16.msra.mxu0 %v554
    %558 = vmatprep.subr.bf16.mxu0 0
    %559 = vmatpush1.bf16.msra.mxu0 0
    %560 = vmatprep.subr.bf16.mxu0 0
    %561 = vmatpush1.bf16.msra.mxu0 0
    %562 = vmatprep.subr.bf16.mxu0 0
    %563 = vmatpush1.bf16.msra.mxu0 0
    %564 = vmatprep.subr.bf16.mxu0 0
    %565 = vmatpush1.bf16.msra.mxu0 0
    %566 = vmatprep.subr.bf16.mxu0 0
    %567 = vmatpush1.bf16.msra.mxu0 0
    %568 = vmatprep.subr.bf16.mxu0 0
    %569 = vmatpush1.bf16.msra.mxu0 0
    %570 = vmatprep.subr.bf16.mxu0 0
    %571 = vmatpush1.bf16.msra.mxu0 0
    %572 = vmatprep.subr.bf16.mxu0 0
    %573 = vmatpush1.bf16.msra.mxu0 0
    %574 = vmatprep.subr.bf16.mxu0 0
    %575 = vmatpush1.bf16.msra.mxu0 0
    %576 = vmatprep.subr.bf16.mxu0 0
    %577 = vmatpush1.bf16.msra.mxu0 0
    %578 = vmatprep.subr.bf16.mxu0 0
    %579 = vmatpush1.bf16.msra.mxu0 0
    %580 = vmatprep.subr.bf16.mxu0 0
    %581 = vmatpush1.bf16.msra.mxu0 0
    %582 = vmatprep.subr.bf16.mxu0 0
    %583 = vmatpush1.bf16.msra.mxu0 0
    %584 = vmatprep.subr.bf16.mxu0 0
    %585 = vmatpush1.bf16.msra.mxu0 0
    %586 = vmatprep.subr.bf16.mxu0 0
    %587 = vmatpush1.bf16.msra.mxu0 0
    %588 = vmatprep.mubr.bf16.mxu0 0
    %589 = vmatmul.mubr.bf16.gmra.mrb[0].mxu0 %v551
    %v590 = vpop.f32.mrb[0].mxu0
    %v591 = vadd.f32 0.0, %v590
    %v592 = vpop.f32.mrb[0].mxu0
    %v593 = vpop.f32.mrb[0].mxu0
    %v594 = vpop.f32.mrb[0].mxu0
    %595 = vdwg.mxu0
    %596 = vrot.lane.b32.xlu0 %v256, 104
    %v597 = vpop.permute.xlu0 %596
    %598 = vrot.lane.b32.xlu0 %v257, 104
    %v599 = vpop.permute.xlu0 %598
    %v601 = vsel %vm259, %v597, 0
    %v604 = vsel %vm259, %v599, 0
    %606 = vmatprep.subr.bf16.mxu0 0
    %607 = vmatpush1.bf16.xpose.msra.mxu0 %v604
    %608 = vmatprep.subr.bf16.mxu0 0
    %609 = vmatpush1.bf16.xpose.msra.mxu0 0
    %610 = vmatprep.subr.bf16.mxu0 0
    %611 = vmatpush1.bf16.xpose.msra.mxu0 0
    %612 = vmatprep.subr.bf16.mxu0 0
    %613 = vmatpush1.bf16.xpose.msra.mxu0 0
    %614 = vmatprep.subr.bf16.mxu0 0
    %615 = vmatpush1.bf16.xpose.msra.mxu0 0
    %616 = vmatprep.subr.bf16.mxu0 0
    %617 = vmatpush1.bf16.xpose.msra.mxu0 0
    %618 = vmatprep.subr.bf16.mxu0 0
    %619 = vmatpush1.bf16.xpose.msra.mxu0 0
    %620 = vmatprep.subr.bf16.mxu0 0
    %621 = vmatpush1.bf16.xpose.msra.mxu0 0
    %622 = vmatprep.subr.bf16.mxu0 0
    %623 = vmatpush1.bf16.xpose.msra.mxu0 0
    %624 = vmatprep.subr.bf16.mxu0 0
    %625 = vmatpush1.bf16.xpose.msra.mxu0 0
    %626 = vmatprep.subr.bf16.mxu0 0
    %627 = vmatpush1.bf16.xpose.msra.mxu0 0
    %628 = vmatprep.subr.bf16.mxu0 0
    %629 = vmatpush1.bf16.xpose.msra.mxu0 0
    %630 = vmatprep.subr.bf16.mxu0 0
    %631 = vmatpush1.bf16.xpose.msra.mxu0 0
    %632 = vmatprep.subr.bf16.mxu0 0
    %633 = vmatpush1.bf16.xpose.msra.mxu0 0
    %634 = vmatprep.subr.bf16.mxu0 0
    %635 = vmatpush1.bf16.xpose.msra.mxu0 0
    %636 = vmatprep.subr.bf16.mxu0 0
    %637 = vmatpush1.bf16.xpose.msra.mxu0 0
    %638 = vmatprep.mubr.bf16.mxu0 0
    %639 = vmatmul.mubr.bf16.gmra.mrb[0].mxu0 %v601
    %v640 = vpop.f32.mrb[0].mxu0
    %v641 = vadd.f32 0.0, %v640
    %v642 = vpop.f32.mrb[0].mxu0
    %v643 = vpop.f32.mrb[0].mxu0
    %v644 = vpop.f32.mrb[0].mxu0
    %645 = vdwg.mxu0
    %v646 = vmul.f32 %v641, 0.35355338
    %v647 = vsel %vm259, %v646, -inf
    %648 = vmax.xlane.f32.xlu0 %v647
    %v649 = vpop.xlane.xlu0 %648
    %v650 = vsub.f32 %v646, %v649
    %v651 = vmul.f32 %v650, 1.442695
    %v652 = vpow.pop %v651
    %v653 = vsel %vm259, %v652, 0.0
    %654 = vadd.xlane.f32.xlu0 %v653
    %v655 = vpop.xlane.xlu0 %654
    %v656 = vrcp.pop %v655
    %v657 = vmul.f32 %v652, %v656
    %s658 = scalar_lea.vmem [#allocation9], 24
    %659 = vst.msk [vmem:[%s658] sm:$0xff] %vm259, %v657
    %v660 = vpack.c.bf16 %v657, %v657
    %661 = vrot.lane.b32.xlu0 %v258, 104
    %v662 = vpop.permute.xlu0 %661
    %v664 = vsel %vm259, %v660, 0
    %v667 = vsel %vm323, %v662, 0
    %669 = vmatprep.subr.bf16.mxu0 0
    %670 = vmatpush1.bf16.msra.mxu0 %v667
    %671 = vmatprep.subr.bf16.mxu0 0
    %672 = vmatpush1.bf16.msra.mxu0 0
    %673 = vmatprep.subr.bf16.mxu0 0
    %674 = vmatpush1.bf16.msra.mxu0 0
    %675 = vmatprep.subr.bf16.mxu0 0
    %676 = vmatpush1.bf16.msra.mxu0 0
    %677 = vmatprep.subr.bf16.mxu0 0
    %678 = vmatpush1.bf16.msra.mxu0 0
    %679 = vmatprep.subr.bf16.mxu0 0
    %680 = vmatpush1.bf16.msra.mxu0 0
    %681 = vmatprep.subr.bf16.mxu0 0
    %682 = vmatpush1.bf16.msra.mxu0 0
    %683 = vmatprep.subr.bf16.mxu0 0
    %684 = vmatpush1.bf16.msra.mxu0 0
    %685 = vmatprep.subr.bf16.mxu0 0
    %686 = vmatpush1.bf16.msra.mxu0 0
    %687 = vmatprep.subr.bf16.mxu0 0
    %688 = vmatpush1.bf16.msra.mxu0 0
    %689 = vmatprep.subr.bf16.mxu0 0
    %690 = vmatpush1.bf16.msra.mxu0 0
    %691 = vmatprep.subr.bf16.mxu0 0
    %692 = vmatpush1.bf16.msra.mxu0 0
    %693 = vmatprep.subr.bf16.mxu0 0
    %694 = vmatpush1.bf16.msra.mxu0 0
    %695 = vmatprep.subr.bf16.mxu0 0
    %696 = vmatpush1.bf16.msra.mxu0 0
    %697 = vmatprep.subr.bf16.mxu0 0
    %698 = vmatpush1.bf16.msra.mxu0 0
    %699 = vmatprep.subr.bf16.mxu0 0
    %700 = vmatpush1.bf16.msra.mxu0 0
    %701 = vmatprep.mubr.bf16.mxu0 0
    %702 = vmatmul.mubr.bf16.gmra.mrb[0].mxu0 %v664
    %v703 = vpop.f32.mrb[0].mxu0
    %v704 = vadd.f32 0.0, %v703
    %v705 = vpop.f32.mrb[0].mxu0
    %v706 = vpop.f32.mrb[0].mxu0
    %v707 = vpop.f32.mrb[0].mxu0
    %708 = vdwg.mxu0
    %710 = vrot.lane.b32.xlu0 %v478, 8
    %v711 = vpop.permute.xlu0 %710
    %714 = vrot.lane.b32.xlu0 %v591, 16
    %v715 = vpop.permute.xlu0 %714
    %718 = vrot.lane.b32.xlu0 %v704, 24
    %v719 = vpop.permute.xlu0 %718
    %v721 = vsel %vm259, %v362, %v711
    %v722 = vsel %vm109, %v721, %v715
    %vm723 = vcmask 195584
    %v724 = vsel %vm723, %v722, %v719
    %v725 = vpack.c.bf16 %v151, %v151
    %v726 = vpack.c.bf16 %v202, %v202
    %v727 = vpack.c.bf16 %v253, %v253
    %v729 = vsel %vm259, %v725, 0
    %v732 = vsel %vm259, %v726, 0
    %734 = vmatprep.subr.bf16.mxu0 0
    %735 = vmatpush1.bf16.xpose.msra.mxu0 %v732
    %736 = vmatprep.subr.bf16.mxu0 0
    %737 = vmatpush1.bf16.xpose.msra.mxu0 0
    %738 = vmatprep.subr.bf16.mxu0 0
    %739 = vmatpush1.bf16.xpose.msra.mxu0 0
    %740 = vmatprep.subr.bf16.mxu0 0
    %741 = vmatpush1.bf16.xpose.msra.mxu0 0
    %742 = vmatprep.subr.bf16.mxu0 0
    %743 = vmatpush1.bf16.xpose.msra.mxu0 0
    %744 = vmatprep.subr.bf16.mxu0 0
    %745 = vmatpush1.bf16.xpose.msra.mxu0 0
    %746 = vmatprep.subr.bf16.mxu0 0
    %747 = vmatpush1.bf16.xpose.msra.mxu0 0
    %748 = vmatprep.subr.bf16.mxu0 0
    %749 = vmatpush1.bf16.xpose.msra.mxu0 0
    %750 = vmatprep.subr.bf16.mxu0 0
    %751 = vmatpush1.bf16.xpose.msra.mxu0 0
    %752 = vmatprep.subr.bf16.mxu0 0
    %753 = vmatpush1.bf16.xpose.msra.mxu0 0
    %754 = vmatprep.subr.bf16.mxu0 0
    %755 = vmatpush1.bf16.xpose.msra.mxu0 0
    %756 = vmatprep.subr.bf16.mxu0 0
    %757 = vmatpush1.bf16.xpose.msra.mxu0 0
    %758 = vmatprep.subr.bf16.mxu0 0
    %759 = vmatpush1.bf16.xpose.msra.mxu0 0
    %760 = vmatprep.subr.bf16.mxu0 0
    %761 = vmatpush1.bf16.xpose.msra.mxu0 0
    %762 = vmatprep.subr.bf16.mxu0 0
    %763 = vmatpush1.bf16.xpose.msra.mxu0 0
    %764 = vmatprep.subr.bf16.mxu0 0
    %765 = vmatpush1.bf16.xpose.msra.mxu0 0
    %766 = vmatprep.mubr.bf16.mxu0 0
    %767 = vmatmul.mubr.bf16.gmra.mrb[0].mxu0 %v729
    %v768 = vpop.f32.mrb[0].mxu0
    %v769 = vadd.f32 0.0, %v768
    %v770 = vpop.f32.mrb[0].mxu0
    %v771 = vpop.f32.mrb[0].mxu0
    %v772 = vpop.f32.mrb[0].mxu0
    %773 = vdwg.mxu0
    %v774 = vmul.f32 %v769, 0.35355338
    %v775 = vsel %vm259, %v774, -inf
    %776 = vmax.xlane.f32.xlu0 %v775
    %v777 = vpop.xlane.xlu0 %776
    %v778 = vsub.f32 %v774, %v777
    %v779 = vmul.f32 %v778, 1.442695
    %v780 = vpow.pop %v779
    %v781 = vsel %vm259, %v780, 0.0
    %782 = vadd.xlane.f32.xlu0 %v781
    %v783 = vpop.xlane.xlu0 %782
    %v784 = vrcp.pop %v783
    %v785 = vmul.f32 %v780, %v784
    %s786 = scalar_lea.vmem [#allocation9], 32
    %787 = vst.msk [vmem:[%s786] sm:$0xff] %vm259, %v785
    %v788 = vpack.c.bf16 %v785, %v785
    %v790 = vsel %vm259, %v788, 0
    %v793 = vsel %vm323, %v727, 0
    %795 = vmatprep.subr.bf16.mxu0 0
    %796 = vmatpush1.bf16.msra.mxu0 %v793
    %797 = vmatprep.subr.bf16.mxu0 0
    %798 = vmatpush1.bf16.msra.mxu0 0
    %799 = vmatprep.subr.bf16.mxu0 0
    %800 = vmatpush1.bf16.msra.mxu0 0
    %801 = vmatprep.subr.bf16.mxu0 0
    %802 = vmatpush1.bf16.msra.mxu0 0
    %803 = vmatprep.subr.bf16.mxu0 0
    %804 = vmatpush1.bf16.msra.mxu0 0
    %805 = vmatprep.subr.bf16.mxu0 0
    %806 = vmatpush1.bf16.msra.mxu0 0
    %807 = vmatprep.subr.bf16.mxu0 0
    %808 = vmatpush1.bf16.msra.mxu0 0
    %809 = vmatprep.subr.bf16.mxu0 0
    %810 = vmatpush1.bf16.msra.mxu0 0
    %811 = vmatprep.subr.bf16.mxu0 0
    %812 = vmatpush1.bf16.msra.mxu0 0
    %813 = vmatprep.subr.bf16.mxu0 0
    %814 = vmatpush1.bf16.msra.mxu0 0
    %815 = vmatprep.subr.bf16.mxu0 0
    %816 = vmatpush1.bf16.msra.mxu0 0
    %817 = vmatprep.subr.bf16.mxu0 0
    %818 = vmatpush1.bf16.msra.mxu0 0
    %819 = vmatprep.subr.bf16.mxu0 0
    %820 = vmatpush1.bf16.msra.mxu0 0
    %821 = vmatprep.subr.bf16.mxu0 0
    %822 = vmatpush1.bf16.msra.mxu0 0
    %823 = vmatprep.subr.bf16.mxu0 0
    %824 = vmatpush1.bf16.msra.mxu0 0
    %825 = vmatprep.subr.bf16.mxu0 0
    %826 = vmatpush1.bf16.msra.mxu0 0
    %827 = vmatprep.mubr.bf16.mxu0 0
    %828 = vmatmul.mubr.bf16.gmra.mrb[0].mxu0 %v790
    %v829 = vpop.f32.mrb[0].mxu0
    %v830 = vadd.f32 0.0, %v829
    %v831 = vpop.f32.mrb[0].mxu0
    %v832 = vpop.f32.mrb[0].mxu0
    %v833 = vpop.f32.mrb[0].mxu0
    %834 = vdwg.mxu0
    %836 = vrot.lane.b32.xlu0 %v725, 120
    %v837 = vpop.permute.xlu0 %836
    %839 = vrot.lane.b32.xlu0 %v726, 120
    %v840 = vpop.permute.xlu0 %839
    %v842 = vsel %vm259, %v837, 0
    %v845 = vsel %vm259, %v840, 0
    %847 = vmatprep.subr.bf16.mxu0 0
    %848 = vmatpush1.bf16.xpose.msra.mxu0 %v845
    %849 = vmatprep.subr.bf16.mxu0 0
    %850 = vmatpush1.bf16.xpose.msra.mxu0 0
    %851 = vmatprep.subr.bf16.mxu0 0
    %852 = vmatpush1.bf16.xpose.msra.mxu0 0
    %853 = vmatprep.subr.bf16.mxu0 0
    %854 = vmatpush1.bf16.xpose.msra.mxu0 0
    %855 = vmatprep.subr.bf16.mxu0 0
    %856 = vmatpush1.bf16.xpose.msra.mxu0 0
    %857 = vmatprep.subr.bf16.mxu0 0
    %858 = vmatpush1.bf16.xpose.msra.mxu0 0
    %859 = vmatprep.subr.bf16.mxu0 0
    %860 = vmatpush1.bf16.xpose.msra.mxu0 0
    %861 = vmatprep.subr.bf16.mxu0 0
    %862 = vmatpush1.bf16.xpose.msra.mxu0 0
    %863 = vmatprep.subr.bf16.mxu0 0
    %864 = vmatpush1.bf16.xpose.msra.mxu0 0
    %865 = vmatprep.subr.bf16.mxu0 0
    %866 = vmatpush1.bf16.xpose.msra.mxu0 0
    %867 = vmatprep.subr.bf16.mxu0 0
    %868 = vmatpush1.bf16.xpose.msra.mxu0 0
    %869 = vmatprep.subr.bf16.mxu0 0
    %870 = vmatpush1.bf16.xpose.msra.mxu0 0
    %871 = vmatprep.subr.bf16.mxu0 0
    %872 = vmatpush1.bf16.xpose.msra.mxu0 0
    %873 = vmatprep.subr.bf16.mxu0 0
    %874 = vmatpush1.bf16.xpose.msra.mxu0 0
    %875 = vmatprep.subr.bf16.mxu0 0
    %876 = vmatpush1.bf16.xpose.msra.mxu0 0
    %877 = vmatprep.subr.bf16.mxu0 0
    %878 = vmatpush1.bf16.xpose.msra.mxu0 0
    %879 = vmatprep.mubr.bf16.mxu0 0
    %880 = vmatmul.mubr.bf16.gmra.mrb[0].mxu0 %v842
    %v881 = vpop.f32.mrb[0].mxu0
    %v882 = vadd.f32 0.0, %v881
    %v883 = vpop.f32.mrb[0].mxu0
    %v884 = vpop.f32.mrb[0].mxu0
    %v885 = vpop.f32.mrb[0].mxu0
    %886 = vdwg.mxu0
    %v887 = vmul.f32 %v882, 0.35355338
    %v888 = vsel %vm259, %v887, -inf
    %889 = vmax.xlane.f32.xlu0 %v888
    %v890 = vpop.xlane.xlu0 %889
    %v891 = vsub.f32 %v887, %v890
    %v892 = vmul.f32 %v891, 1.442695
    %v893 = vpow.pop %v892
    %v894 = vsel %vm259, %v893, 0.0
    %895 = vadd.xlane.f32.xlu0 %v894
    %v896 = vpop.xlane.xlu0 %895
    %v897 = vrcp.pop %v896
    %v898 = vmul.f32 %v893, %v897
    %s899 = scalar_lea.vmem [#allocation9], 40
    %900 = vst.msk [vmem:[%s899] sm:$0xff] %vm259, %v898
    %v901 = vpack.c.bf16 %v898, %v898
    %903 = vrot.lane.b32.xlu0 %v727, 120
    %v904 = vpop.permute.xlu0 %903
    %v906 = vsel %vm259, %v901, 0
    %v909 = vsel %vm323, %v904, 0
    %911 = vmatprep.subr.bf16.mxu0 0
    %912 = vmatpush1.bf16.msra.mxu0 %v909
    %913 = vmatprep.subr.bf16.mxu0 0
    %914 = vmatpush1.bf16.msra.mxu0 0
    %915 = vmatprep.subr.bf16.mxu0 0
    %916 = vmatpush1.bf16.msra.mxu0 0
    %917 = vmatprep.subr.bf16.mxu0 0
    %918 = vmatpush1.bf16.msra.mxu0 0
    %919 = vmatprep.subr.bf16.mxu0 0
    %920 = vmatpush1.bf16.msra.mxu0 0
    %921 = vmatprep.subr.bf16.mxu0 0
    %922 = vmatpush1.bf16.msra.mxu0 0
    %923 = vmatprep.subr.bf16.mxu0 0
    %924 = vmatpush1.bf16.msra.mxu0 0
    %925 = vmatprep.subr.bf16.mxu0 0
    %926 = vmatpush1.bf16.msra.mxu0 0
    %927 = vmatprep.subr.bf16.mxu0 0
    %928 = vmatpush1.bf16.msra.mxu0 0
    %929 = vmatprep.subr.bf16.mxu0 0
    %930 = vmatpush1.bf16.msra.mxu0 0
    %931 = vmatprep.subr.bf16.mxu0 0
    %932 = vmatpush1.bf16.msra.mxu0 0
    %933 = vmatprep.subr.bf16.mxu0 0
    %934 = vmatpush1.bf16.msra.mxu0 0
    %935 = vmatprep.subr.bf16.mxu0 0
    %936 = vmatpush1.bf16.msra.mxu0 0
    %937 = vmatprep.subr.bf16.mxu0 0
    %938 = vmatpush1.bf16.msra.mxu0 0
    %939 = vmatprep.subr.bf16.mxu0 0
    %940 = vmatpush1.bf16.msra.mxu0 0
    %941 = vmatprep.subr.bf16.mxu0 0
    %942 = vmatpush1.bf16.msra.mxu0 0
    %943 = vmatprep.mubr.bf16.mxu0 0
    %944 = vmatmul.mubr.bf16.gmra.mrb[0].mxu0 %v906
    %v945 = vpop.f32.mrb[0].mxu0
    %v946 = vadd.f32 0.0, %v945
    %v947 = vpop.f32.mrb[0].mxu0
    %v948 = vpop.f32.mrb[0].mxu0
    %v949 = vpop.f32.mrb[0].mxu0
    %950 = vdwg.mxu0
    %951 = vrot.lane.b32.xlu0 %v725, 112
    %v952 = vpop.permute.xlu0 %951
    %953 = vrot.lane.b32.xlu0 %v726, 112
    %v954 = vpop.permute.xlu0 %953
    %v956 = vsel %vm259, %v952, 0
    %v959 = vsel %vm259, %v954, 0
    %961 = vmatprep.subr.bf16.mxu0 0
    %962 = vmatpush1.bf16.xpose.msra.mxu0 %v959
    %963 = vmatprep.subr.bf16.mxu0 0
    %964 = vmatpush1.bf16.xpose.msra.mxu0 0
    %965 = vmatprep.subr.bf16.mxu0 0
    %966 = vmatpush1.bf16.xpose.msra.mxu0 0
    %967 = vmatprep.subr.bf16.mxu0 0
    %968 = vmatpush1.bf16.xpose.msra.mxu0 0
    %969 = vmatprep.subr.bf16.mxu0 0
    %970 = vmatpush1.bf16.xpose.msra.mxu0 0
    %971 = vmatprep.subr.bf16.mxu0 0
    %972 = vmatpush1.bf16.xpose.msra.mxu0 0
    %973 = vmatprep.subr.bf16.mxu0 0
    %974 = vmatpush1.bf16.xpose.msra.mxu0 0
    %975 = vmatprep.subr.bf16.mxu0 0
    %976 = vmatpush1.bf16.xpose.msra.mxu0 0
    %977 = vmatprep.subr.bf16.mxu0 0
    %978 = vmatpush1.bf16.xpose.msra.mxu0 0
    %979 = vmatprep.subr.bf16.mxu0 0
    %980 = vmatpush1.bf16.xpose.msra.mxu0 0
    %981 = vmatprep.subr.bf16.mxu0 0
    %982 = vmatpush1.bf16.xpose.msra.mxu0 0
    %983 = vmatprep.subr.bf16.mxu0 0
    %984 = vmatpush1.bf16.xpose.msra.mxu0 0
    %985 = vmatprep.subr.bf16.mxu0 0
    %986 = vmatpush1.bf16.xpose.msra.mxu0 0
    %987 = vmatprep.subr.bf16.mxu0 0
    %988 = vmatpush1.bf16.xpose.msra.mxu0 0
    %989 = vmatprep.subr.bf16.mxu0 0
    %990 = vmatpush1.bf16.xpose.msra.mxu0 0
    %991 = vmatprep.subr.bf16.mxu0 0
    %992 = vmatpush1.bf16.xpose.msra.mxu0 0
    %993 = vmatprep.mubr.bf16.mxu0 0
    %994 = vmatmul.mubr.bf16.gmra.mrb[0].mxu0 %v956
    %v995 = vpop.f32.mrb[0].mxu0
    %v996 = vadd.f32 0.0, %v995
    %v997 = vpop.f32.mrb[0].mxu0
    %v998 = vpop.f32.mrb[0].mxu0
    %v999 = vpop.f32.mrb[0].mxu0
    %1000 = vdwg.mxu0
    %v1001 = vmul.f32 %v996, 0.35355338
    %v1002 = vsel %vm259, %v1001, -inf
    %1003 = vmax.xlane.f32.xlu0 %v1002
    %v1004 = vpop.xlane.xlu0 %1003
    %v1005 = vsub.f32 %v1001, %v1004
    %v1006 = vmul.f32 %v1005, 1.442695
    %v1007 = vpow.pop %v1006
    %v1008 = vsel %vm259, %v1007, 0.0
    %1009 = vadd.xlane.f32.xlu0 %v1008
    %v1010 = vpop.xlane.xlu0 %1009
    %v1011 = vrcp.pop %v1010
    %v1012 = vmul.f32 %v1007, %v1011
    %s1013 = scalar_lea.vmem [#allocation9], 48
    %1014 = vst.msk [vmem:[%s1013] sm:$0xff] %vm259, %v1012
    %v1015 = vpack.c.bf16 %v1012, %v1012
    %1016 = vrot.lane.b32.xlu0 %v727, 112
    %v1017 = vpop.permute.xlu0 %1016
    %v1019 = vsel %vm259, %v1015, 0
    %v1022 = vsel %vm323, %v1017, 0
    %1024 = vmatprep.subr.bf16.mxu0 0
    %1025 = vmatpush1.bf16.msra.mxu0 %v1022
    %1026 = vmatprep.subr.bf16.mxu0 0
    %1027 = vmatpush1.bf16.msra.mxu0 0
    %1028 = vmatprep.subr.bf16.mxu0 0
    %1029 = vmatpush1.bf16.msra.mxu0 0
    %1030 = vmatprep.subr.bf16.mxu0 0
    %1031 = vmatpush1.bf16.msra.mxu0 0
    %1032 = vmatprep.subr.bf16.mxu0 0
    %1033 = vmatpush1.bf16.msra.mxu0 0
    %1034 = vmatprep.subr.bf16.mxu0 0
    %1035 = vmatpush1.bf16.msra.mxu0 0
    %1036 = vmatprep.subr.bf16.mxu0 0
    %1037 = vmatpush1.bf16.msra.mxu0 0
    %1038 = vmatprep.subr.bf16.mxu0 0
    %1039 = vmatpush1.bf16.msra.mxu0 0
    %1040 = vmatprep.subr.bf16.mxu0 0
    %1041 = vmatpush1.bf16.msra.mxu0 0
    %1042 = vmatprep.subr.bf16.mxu0 0
    %1043 = vmatpush1.bf16.msra.mxu0 0
    %1044 = vmatprep.subr.bf16.mxu0 0
    %1045 = vmatpush1.bf16.msra.mxu0 0
    %1046 = vmatprep.subr.bf16.mxu0 0
    %1047 = vmatpush1.bf16.msra.mxu0 0
    %1048 = vmatprep.subr.bf16.mxu0 0
    %1049 = vmatpush1.bf16.msra.mxu0 0
    %1050 = vmatprep.subr.bf16.mxu0 0
    %1051 = vmatpush1.bf16.msra.mxu0 0
    %1052 = vmatprep.subr.bf16.mxu0 0
    %1053 = vmatpush1.bf16.msra.mxu0 0
    %1054 = vmatprep.subr.bf16.mxu0 0
    %1055 = vmatpush1.bf16.msra.mxu0 0
    %1056 = vmatprep.mubr.bf16.mxu0 0
    %1057 = vmatmul.mubr.bf16.gmra.mrb[0].mxu0 %v1019
    %v1058 = vpop.f32.mrb[0].mxu0
    %v1059 = vadd.f32 0.0, %v1058
    %v1060 = vpop.f32.mrb[0].mxu0
    %v1061 = vpop.f32.mrb[0].mxu0
    %v1062 = vpop.f32.mrb[0].mxu0
    %1063 = vdwg.mxu0
    %1064 = vrot.lane.b32.xlu0 %v725, 104
    %v1065 = vpop.permute.xlu0 %1064
    %1066 = vrot.lane.b32.xlu0 %v726, 104
    %v1067 = vpop.permute.xlu0 %1066
    %v1069 = vsel %vm259, %v1065, 0
    %v1072 = vsel %vm259, %v1067, 0
    %1074 = vmatprep.subr.bf16.mxu0 0
    %1075 = vmatpush1.bf16.xpose.msra.mxu0 %v1072
    %1076 = vmatprep.subr.bf16.mxu0 0
    %1077 = vmatpush1.bf16.xpose.msra.mxu0 0
    %1078 = vmatprep.subr.bf16.mxu0 0
    %1079 = vmatpush1.bf16.xpose.msra.mxu0 0
    %1080 = vmatprep.subr.bf16.mxu0 0
    %1081 = vmatpush1.bf16.xpose.msra.mxu0 0
    %1082 = vmatprep.subr.bf16.mxu0 0
    %1083 = vmatpush1.bf16.xpose.msra.mxu0 0
    %1084 = vmatprep.subr.bf16.mxu0 0
    %1085 = vmatpush1.bf16.xpose.msra.mxu0 0
    %1086 = vmatprep.subr.bf16.mxu0 0
    %1087 = vmatpush1.bf16.xpose.msra.mxu0 0
    %1088 = vmatprep.subr.bf16.mxu0 0
    %1089 = vmatpush1.bf16.xpose.msra.mxu0 0
    %1090 = vmatprep.subr.bf16.mxu0 0
    %1091 = vmatpush1.bf16.xpose.msra.mxu0 0
    %1092 = vmatprep.subr.bf16.mxu0 0
    %1093 = vmatpush1.bf16.xpose.msra.mxu0 0
    %1094 = vmatprep.subr.bf16.mxu0 0
    %1095 = vmatpush1.bf16.xpose.msra.mxu0 0
    %1096 = vmatprep.subr.bf16.mxu0 0
    %1097 = vmatpush1.bf16.xpose.msra.mxu0 0
    %1098 = vmatprep.subr.bf16.mxu0 0
    %1099 = vmatpush1.bf16.xpose.msra.mxu0 0
    %1100 = vmatprep.subr.bf16.mxu0 0
    %1101 = vmatpush1.bf16.xpose.msra.mxu0 0
    %1102 = vmatprep.subr.bf16.mxu0 0
    %1103 = vmatpush1.bf16.xpose.msra.mxu0 0
    %1104 = vmatprep.subr.bf16.mxu0 0
    %1105 = vmatpush1.bf16.xpose.msra.mxu0 0
    %1106 = vmatprep.mubr.bf16.mxu0 0
    %1107 = vmatmul.mubr.bf16.gmra.mrb[0].mxu0 %v1069
    %v1108 = vpop.f32.mrb[0].mxu0
    %v1109 = vadd.f32 0.0, %v1108
    %v1110 = vpop.f32.mrb[0].mxu0
    %v1111 = vpop.f32.mrb[0].mxu0
    %v1112 = vpop.f32.mrb[0].mxu0
    %1113 = vdwg.mxu0
    %v1114 = vmul.f32 %v1109, 0.35355338
    %v1115 = vsel %vm259, %v1114, -inf
    %1116 = vmax.xlane.f32.xlu0 %v1115
    %v1117 = vpop.xlane.xlu0 %1116
    %v1118 = vsub.f32 %v1114, %v1117
    %v1119 = vmul.f32 %v1118, 1.442695
    %v1120 = vpow.pop %v1119
    %v1121 = vsel %vm259, %v1120, 0.0
    %1122 = vadd.xlane.f32.xlu0 %v1121
    %v1123 = vpop.xlane.xlu0 %1122
    %v1124 = vrcp.pop %v1123
    %v1125 = vmul.f32 %v1120, %v1124
    %s1126 = scalar_lea.vmem [#allocation9], 56
    %1127 = vst.msk [vmem:[%s1126] sm:$0xff] %vm259, %v1125
    %v1128 = vpack.c.bf16 %v1125, %v1125
    %1129 = vrot.lane.b32.xlu0 %v727, 104
    %v1130 = vpop.permute.xlu0 %1129
    %v1132 = vsel %vm259, %v1128, 0
    %v1135 = vsel %vm323, %v1130, 0
    %1137 = vmatprep.subr.bf16.mxu0 0
    %1138 = vmatpush1.bf16.msra.mxu0 %v1135
    %1139 = vmatprep.subr.bf16.mxu0 0
    %1140 = vmatpush1.bf16.msra.mxu0 0
    %1141 = vmatprep.subr.bf16.mxu0 0
    %1142 = vmatpush1.bf16.msra.mxu0 0
    %1143 = vmatprep.subr.bf16.mxu0 0
    %1144 = vmatpush1.bf16.msra.mxu0 0
    %1145 = vmatprep.subr.bf16.mxu0 0
    %1146 = vmatpush1.bf16.msra.mxu0 0
    %1147 = vmatprep.subr.bf16.mxu0 0
    %1148 = vmatpush1.bf16.msra.mxu0 0
    %1149 = vmatprep.subr.bf16.mxu0 0
    %1150 = vmatpush1.bf16.msra.mxu0 0
    %1151 = vmatprep.subr.bf16.mxu0 0
    %1152 = vmatpush1.bf16.msra.mxu0 0
    %1153 = vmatprep.subr.bf16.mxu0 0
    %1154 = vmatpush1.bf16.msra.mxu0 0
    %1155 = vmatprep.subr.bf16.mxu0 0
    %1156 = vmatpush1.bf16.msra.mxu0 0
    %1157 = vmatprep.subr.bf16.mxu0 0
    %1158 = vmatpush1.bf16.msra.mxu0 0
    %1159 = vmatprep.subr.bf16.mxu0 0
    %1160 = vmatpush1.bf16.msra.mxu0 0
    %1161 = vmatprep.subr.bf16.mxu0 0
    %1162 = vmatpush1.bf16.msra.mxu0 0
    %1163 = vmatprep.subr.bf16.mxu0 0
    %1164 = vmatpush1.bf16.msra.mxu0 0
    %1165 = vmatprep.subr.bf16.mxu0 0
    %1166 = vmatpush1.bf16.msra.mxu0 0
    %1167 = vmatprep.subr.bf16.mxu0 0
    %1168 = vmatpush1.bf16.msra.mxu0 0
    %1169 = vmatprep.mubr.bf16.mxu0 0
    %1170 = vmatmul.mubr.bf16.gmra.mrb[0].mxu0 %v1132
    %v1171 = vpop.f32.mrb[0].mxu0
    %v1172 = vadd.f32 0.0, %v1171
    %v1173 = vpop.f32.mrb[0].mxu0
    %v1174 = vpop.f32.mrb[0].mxu0
    %v1175 = vpop.f32.mrb[0].mxu0
    %1176 = vdwg.mxu0
    %1178 = vrot.lane.b32.xlu0 %v946, 8
    %v1179 = vpop.permute.xlu0 %1178
    %1182 = vrot.lane.b32.xlu0 %v1059, 16
    %v1183 = vpop.permute.xlu0 %1182
    %1186 = vrot.lane.b32.xlu0 %v1172, 24
    %v1187 = vpop.permute.xlu0 %1186
    %v1189 = vsel %vm259, %v830, %v1179
    %v1190 = vsel %vm109, %v1189, %v1183
    %v1191 = vsel %vm723, %v1190, %v1187
    %v1192 = vpack.c.bf16 %v1191, %v724
    %v1193 = vld [vmem:[%s9] sm:$0xff]
    %v1194 = vld [vmem:[%s9 + $0x8] sm:$0xff]
    %v1195 = vld [vmem:[%s9 + $0x10] sm:$0xff]
    %v1196 = vld [vmem:[%s9 + $0x18] sm:$0xff]
    %v1197 = vpack.c.bf16 %v1194, %v1193
    %v1198 = vpack.c.bf16 %v1196, %v1195
    %v1199 = vld [vmem:[%s10] sm:$0x1]
    %v1201 = vlaneseq
    %v1202 = vshrl.u32 %v1201, 7
    %v1203 = vsub.s32 0, %v1202
    %v1204 = vrot.slane %v1199, %v1203
    %vm1206 = vcmask 261120
    %v1208 = vsel %vm1206, %v1192, 0
    %1210 = vmatprep.subr.bf16.mxu0 0
    %1211 = vmatpush1.bf16.msra.mxu0 %v1197
    %1212 = vmatprep.subr.bf16.mxu0 0
    %1213 = vmatpush1.bf16.msra.mxu0 %v1198
    %1214 = vmatprep.subr.bf16.mxu0 0
    %1215 = vmatpush1.bf16.msra.mxu0 0
    %1216 = vmatprep.subr.bf16.mxu0 0
    %1217 = vmatpush1.bf16.msra.mxu0 0
    %1218 = vmatprep.subr.bf16.mxu0 0
    %1219 = vmatpush1.bf16.msra.mxu0 0
    %1220 = vmatprep.subr.bf16.mxu0 0
    %1221 = vmatpush1.bf16.msra.mxu0 0
    %1222 = vmatprep.subr.bf16.mxu0 0
    %1223 = vmatpush1.bf16.msra.mxu0 0
    %1224 = vmatprep.subr.bf16.mxu0 0
    %1225 = vmatpush1.bf16.msra.mxu0 0
    %1226 = vmatprep.subr.bf16.mxu0 0
    %1227 = vmatpush1.bf16.msra.mxu0 0
    %1228 = vmatprep.subr.bf16.mxu0 0
    %1229 = vmatpush1.bf16.msra.mxu0 0
    %1230 = vmatprep.subr.bf16.mxu0 0
    %1231 = vmatpush1.bf16.msra.mxu0 0
    %1232 = vmatprep.subr.bf16.mxu0 0
    %1233 = vmatpush1.bf16.msra.mxu0 0
    %1234 = vmatprep.subr.bf16.mxu0 0
    %1235 = vmatpush1.bf16.msra.mxu0 0
    %1236 = vmatprep.subr.bf16.mxu0 0
    %1237 = vmatpush1.bf16.msra.mxu0 0
    %1238 = vmatprep.subr.bf16.mxu0 0
    %1239 = vmatpush1.bf16.msra.mxu0 0
    %1240 = vmatprep.subr.bf16.mxu0 0
    %1241 = vmatpush1.bf16.msra.mxu0 0
    %1242 = vmatprep.mubr.bf16.mxu0 0
    %1243 = vmatmul.mubr.bf16.gmra.mrb[0].mxu0 %v1208
    %v1244 = vpop.f32.mrb[0].mxu0
    %v1245 = vadd.f32 %v1204, %v1244
    %v1246 = vpop.f32.mrb[0].mxu0
    %v1247 = vpop.f32.mrb[0].mxu0
    %v1248 = vadd.f32 %v1204, %v1247
    %v1249 = vpop.f32.mrb[0].mxu0
    %1250 = vdwg.mxu0
    %1251 = vst.msk [vmem:[#allocation8] sm:$0xff] %vm109, %v1245
    %1252 = vst.msk [vmem:[#allocation8 + $0x8] sm:$0xff] %vm109, %v1248
    // Predicated region
    $region58: #{tpu_custom_call.1} parent=1 // pred_check
      _
    $region59: #{tpu_custom_call.1} parent=1 // pred_check_branch
      %1254 = sbr.rel (0) target = $region61
    $region60: #{tpu_custom_call.1} parent=1 // pred_region
      %s1256 = ssub.s32 256, 256
      %1257 = vsyncadd [#allocation4], %s1256
      %s1258 = sshll.u32 [#allocation8], 4
      %s1259 = int_to_ptr.vmem [resolvable:$true] %s1258
      %1264 = dma.vmem_to_hbm [thread:$0]  %s1259, 256, %s11, [#allocation4], 128, 128, 8
    $region61: #{tpu_custom_call.1} parent=1 // pred_fallthru
      _
    // Predicated region
    $region62: #{tpu_custom_call.1} parent=1 // pred_check
      _
    $region63: #{tpu_custom_call.1} parent=1 // pred_check_branch
      %1266 = sbr.rel (0) target = $region65
    $region64: #{tpu_custom_call.1} parent=1 // pred_region
      %s1268 = ssub.s32 1024, 1024
      %1269 = vsyncadd [#allocation10], %s1268
      %s1270 = sshll.u32 [#allocation9], 4
      %s1271 = int_to_ptr.vmem [resolvable:$true] %s1270
      %1276 = dma.vmem_to_hbm [thread:$0]  %s1271, 1024, %s12, [#allocation10], 128, 128, 8
    $region65: #{tpu_custom_call.1} parent=1 // pred_fallthru
      _
    // Predicated region
    $region66: #{tpu_custom_call.1} parent=1 // pred_check
      _
    $region67: #{tpu_custom_call.1} parent=1 // pred_check_branch
      %1278 = sbr.rel (0) target = $region69
    $region68: #{tpu_custom_call.1} parent=1 // pred_region
      %1279 = dma.done [#allocation4], 256
    $region69: #{tpu_custom_call.1} parent=1 // pred_fallthru
      _
    // Predicated region
    $region70: #{tpu_custom_call.1} parent=1 // pred_check
      _
    $region71: #{tpu_custom_call.1} parent=1 // pred_check_branch
      %1281 = sbr.rel (0) target = $region73
    $region72: #{tpu_custom_call.1} parent=1 // pred_region
      %1282 = dma.done [#allocation10], 1024
    $region73: #{tpu_custom_call.1} parent=1 // pred_fallthru
      _
    %1283 = vsyncpa [#allocation3], 1
    %1284 = vsyncpa [#allocation6], 1
    %1285 = vsyncpa [#allocation4], 1
    %1286 = vsyncpa [#allocation10], 1

</llo_original>
